<compile_context>
chip_gen: v5e
topology: v5e:2x2
jax: 0.10.0
libtpu: 0.0.40
codegen_flags: <defaults>
</compile_context>

<pallas_src>
import functools

import jax
import jax.numpy as jnp
from jax.experimental import pallas as pl
from jax.experimental.pallas import tpu as pltpu


# ----------------------------------------------------------------------------
# In-kernel helpers
# ----------------------------------------------------------------------------

def _ln(x, g, b, eps):
    """Row-wise LayerNorm in f32 (statistics kept in f32)."""
    mean = jnp.mean(x, axis=-1, keepdims=True)
    var = jnp.mean(jnp.square(x - mean), axis=-1, keepdims=True)
    return (x - mean) * jax.lax.rsqrt(var + eps) * g + b


# ----------------------------------------------------------------------------
# Fully fused forward kernel (per batch row):
#   for each layer: LN1 -> fused QKV matmul -> causal MHA -> out proj
#                   (+residual) -> LN2 -> FFN(ReLU) (+residual)
#   then: final LN -> tied lm_head matmul -> vocab softmax
# ----------------------------------------------------------------------------

def _coherence_fused_kernel(h_ref,
                            ln1g_ref, ln1b_ref, wqkv_ref, bqkv_ref,
                            wo_ref, bo_ref, ln2g_ref, ln2b_ref,
                            w1_ref, b1_ref, w2_ref, b2_ref,
                            lnfg_ref, lnfb_ref, lmT_ref,
                            hid_ref, prob_ref,
                            *, num_layers, num_heads, head_dim, eps, scale):
    H, Dh = num_heads, head_dim
    D = H * Dh
    h = h_ref[...].astype(jnp.float32)                     # [S, D]
    S = h.shape[0]

    # Causal mask built once per grid step, shared by all layers and heads.
    row = jax.lax.broadcasted_iota(jnp.int32, (S, S), 0)
    col = jax.lax.broadcasted_iota(jnp.int32, (S, S), 1)
    causal = col <= row

    for l in range(num_layers):                            # static unroll over layers
        # --- self attention (pre-LN) ---
        hn = _ln(h, ln1g_ref[l], ln1b_ref[l], eps)
        # fused QKV projection: one MXU pass with N = 3*D (lane-denser output).
        qkv = jnp.dot(hn, wqkv_ref[l],
                      preferred_element_type=jnp.float32) + bqkv_ref[l]   # [S, 3D]

        heads_out = []
        for hh in range(H):                                # static unroll over heads
            lo = hh * Dh
            qh = qkv[:, lo:lo + Dh] * scale                # [S, Dh]
            kh = qkv[:, D + lo:D + lo + Dh]                # [S, Dh]
            vh = qkv[:, 2 * D + lo:2 * D + lo + Dh]        # [S, Dh]
            s = jnp.dot(qh, kh.T, preferred_element_type=jnp.float32)     # [S, S]
            s = jnp.where(causal, s, -1e30)
            m = jnp.max(s, axis=-1, keepdims=True)
            p = jnp.exp(s - m)
            # divide -> EUP reciprocal + VPU multiply (off the VALU mul slots)
            p = p * pl.reciprocal(jnp.sum(p, axis=-1, keepdims=True), approx=True)
            heads_out.append(jnp.dot(p, vh, preferred_element_type=jnp.float32))
        attn = jnp.concatenate(heads_out, axis=-1)         # [S, D]

        attn = jnp.dot(attn, wo_ref[l],
                       preferred_element_type=jnp.float32) + bo_ref[l]
        h = h + attn                                       # residual, in-register

        # --- feed-forward (pre-LN, ReLU) ---
        hn = _ln(h, ln2g_ref[l], ln2b_ref[l], eps)
        ff = jnp.dot(hn, w1_ref[l],
                     preferred_element_type=jnp.float32) + b1_ref[l]
        ff = jnp.maximum(ff, 0.0)
        ff = jnp.dot(ff, w2_ref[l],
                     preferred_element_type=jnp.float32) + b2_ref[l]
        h = h + ff                                         # residual, in-register

    # --- head: final LN + tied lm_head + vocab softmax ---
    hn = _ln(h, lnfg_ref[...], lnfb_ref[...], eps)
    hid_ref[...] = hn.astype(hid_ref.dtype)                # last_hidden_states
    logits = jnp.dot(hn, lmT_ref[...], preferred_element_type=jnp.float32)  # [S, V]
    m = jnp.max(logits, axis=-1, keepdims=True)
    e = jnp.exp(logits - m)
    inv = pl.reciprocal(jnp.sum(e, axis=-1, keepdims=True), approx=True)
    prob_ref[...] = (e * inv).astype(prob_ref.dtype)


def pallas_coherence_core(h, layers, lnf_g, lnf_b, lm_head_t, *,
                          batch, seq, num_layers, num_heads, head_dim, eps=1e-5):
    """h: [batch*seq, D] -> (last_hidden [batch*seq, D], probs [batch*seq, V])."""
    M, D = h.shape
    assert M == batch * seq
    V = lm_head_t.shape[1]
    scale = 1.0 / (head_dim ** 0.5)
    kernel = functools.partial(_coherence_fused_kernel, num_layers=num_layers,
                               num_heads=num_heads, head_dim=head_dim,
                               eps=eps, scale=scale)

    def full(arr):
        # Constant index_map -> Pallas keeps the (small) weight block resident
        # across grid steps instead of re-DMAing it.
        nd = arr.ndim
        return pl.BlockSpec(arr.shape, lambda b, _nd=nd: (0,) * _nd)

    in_specs = [
        pl.BlockSpec((seq, D), lambda b: (b, 0)),           # activations, per batch row
        full(layers["ln1_g"]), full(layers["ln1_b"]),       # [L,1,D] ln1 gamma / beta
        full(layers["wqkv"]), full(layers["bqkv"]),         # [L,D,3D] / [L,1,3D]
        full(layers["wo"]), full(layers["bo"]),             # [L,D,D] / [L,1,D]
        full(layers["ln2_g"]), full(layers["ln2_b"]),       # [L,1,D]
        full(layers["w1"]), full(layers["b1"]),             # [L,D,F] / [L,1,F]
        full(layers["w2"]), full(layers["b2"]),             # [L,F,D] / [L,1,D]
        full(lnf_g), full(lnf_b),                           # [1,D]
        full(lm_head_t),                                    # [D,V] (pre-transposed)
    ]
    out_specs = (pl.BlockSpec((seq, D), lambda b: (b, 0)),
                 pl.BlockSpec((seq, V), lambda b: (b, 0)))

    return pl.pallas_call(
        kernel,
        out_shape=(jax.ShapeDtypeStruct((M, D), jnp.float32),
                   jax.ShapeDtypeStruct((M, V), jnp.float32)),
        grid=(batch,),
        in_specs=in_specs,
        out_specs=out_specs,
        compiler_params=pltpu.CompilerParams(dimension_semantics=("parallel",)),
    )(h, layers["ln1_g"], layers["ln1_b"], layers["wqkv"], layers["bqkv"],
      layers["wo"], layers["bo"], layers["ln2_g"], layers["ln2_b"],
      layers["w1"], layers["b1"], layers["w2"], layers["b2"],
      lnf_g, lnf_b, lm_head_t)


# ----------------------------------------------------------------------------
# Mini-OPT parameter construction (deterministic, synthetic)
# ----------------------------------------------------------------------------

CFG = dict(vocab_size=128, embed_dim=32, num_heads=2, ffn_dim=64,
           num_layers=2, max_positions=64)


def init_params(key, cfg):
    V, D, F, L = cfg["vocab_size"], cfg["embed_dim"], cfg["ffn_dim"], cfg["num_layers"]
    P = cfg["max_positions"] + 2  # OPT positional-embedding offset of 2
    ks = jax.random.split(key, 2 + L)
    s = 0.02

    def nrm(k, shape):
        return (s * jax.random.normal(k, shape)).astype(jnp.float32)

    embed_tokens = nrm(ks[0], (V, D))

    per_layer = []
    for l in range(L):
        lk = jax.random.split(ks[2 + l], 6)
        wq, wk, wv = nrm(lk[0], (D, D)), nrm(lk[1], (D, D)), nrm(lk[2], (D, D))
        per_layer.append({
            "ln1_g": jnp.ones((1, D), jnp.float32),
            "ln1_b": jnp.zeros((1, D), jnp.float32),
            # fused QKV weight/bias (one [D,3D] MXU pass instead of three).
            "wqkv": jnp.concatenate([wq, wk, wv], axis=1),
            "bqkv": jnp.zeros((1, 3 * D), jnp.float32),
            "wo": nrm(lk[3], (D, D)), "bo": jnp.zeros((1, D), jnp.float32),
            "ln2_g": jnp.ones((1, D), jnp.float32),
            "ln2_b": jnp.zeros((1, D), jnp.float32),
            "w1": nrm(lk[4], (D, F)), "b1": jnp.zeros((1, F), jnp.float32),
            "w2": nrm(lk[5], (F, D)), "b2": jnp.zeros((1, D), jnp.float32),
        })
    # Stack all layer params along a leading [L, ...] axis -> single broadcast
    # input per weight, constant index_map in the fused kernel.
    layers = {k: jnp.stack([lp[k] for lp in per_layer], axis=0)
              for k in per_layer[0]}

    return {
        "embed_tokens": embed_tokens,
        "embed_positions": nrm(ks[1], (P, D)),
        "lnf_g": jnp.ones((1, D), jnp.float32),
        "lnf_b": jnp.zeros((1, D), jnp.float32),
        # tied lm_head, transposed once at init (no per-forward transpose).
        "lm_head_T": embed_tokens.T,
        "layers": layers,
    }


# ----------------------------------------------------------------------------
# Forward pass (mirrors CoherenceEvaluator.forward semantics)
# ----------------------------------------------------------------------------

def coherence_forward(params, input_ids, cfg):
    """input_ids: int32 [B, S] -> (last_hidden [B,S,D] f32, probs [B,S,V] f32)."""
    B, S = input_ids.shape
    D, H, L = cfg["embed_dim"], cfg["num_heads"], cfg["num_layers"]
    Dh = D // H
    V = cfg["vocab_size"]

    # Embedding lookups are gather glue (kept in plain JAX).
    tok = jnp.take(params["embed_tokens"], input_ids, axis=0)          # [B,S,D]
    pos_ids = jnp.arange(S, dtype=jnp.int32) + 2                       # OPT offset
    pos = jnp.take(params["embed_positions"], pos_ids, axis=0)         # [S,D]
    h = (tok + pos[None, :, :]).reshape(B * S, D).astype(jnp.float32)  # [B*S, D]

    # ONE fused Pallas call: all decoder layers + final LN + tied lm_head +
    # vocab softmax.  Activations never leave VMEM between layers.
    last_hidden, probs = pallas_coherence_core(
        h, params["layers"], params["lnf_g"], params["lnf_b"], params["lm_head_T"],
        batch=B, seq=S, num_layers=L, num_heads=H, head_dim=Dh)

    # TODO(synk): tokenizer-based methods (evaluate_coherence / compute_coherence
    # host-side numpy log/mean over gathered token probabilities) are host glue,
    # not kernel work; only forward() is implemented here.
    # TODO(synk): for real OPT shapes (D=768, V~50k, S up to 2048) switch matmul
    # inputs to bf16, tile the lm_head/softmax over a padded vocab grid axis,
    # split layers back into per-layer calls (weights no longer fit VMEM), and
    # replace the materialized [S,S] score matrix with a flash-style KV loop.
    return last_hidden.reshape(B, S, D), probs.reshape(B, S, V)


# ----------------------------------------------------------------------------
# Main
# ----------------------------------------------------------------------------

if __name__ == "__main__":
    key = jax.random.PRNGKey(0)
    pkey, ikey = jax.random.split(key)
    params = init_params(pkey, CFG)

    B, S = 2, 8
    input_ids = jax.random.randint(ikey, (B, S), 0, CFG["vocab_size"], dtype=jnp.int32)

    fwd = jax.jit(functools.partial(coherence_forward, cfg=CFG))
    last_hidden, probs = fwd(params, input_ids)
    jax.block_until_ready((last_hidden, probs))

    assert last_hidden.shape == (B, S, CFG["embed_dim"])
    assert probs.shape == (B, S, CFG["vocab_size"])
    # probabilities sum to ~1 along vocab (approx EUP reciprocal -> loose tol)
    assert jnp.allclose(jnp.sum(probs, axis=-1), 1.0, atol=5e-3)
    assert bool(jnp.all(jnp.isfinite(last_hidden))) and bool(jnp.all(jnp.isfinite(probs)))

    print("KERNEL_OK")
</pallas_src>

<mosaic_0001>
module attributes {stable_mosaic.version = 11 : i64} {
  func.func @_coherence_fused_kernel(%arg0: i32, %arg1: memref<8x32xf32, #tpu.memory_space<vmem>>, %arg2: memref<2x1x32xf32, #tpu.memory_space<vmem>>, %arg3: memref<2x1x32xf32, #tpu.memory_space<vmem>>, %arg4: memref<2x32x96xf32, #tpu.memory_space<vmem>>, %arg5: memref<2x1x96xf32, #tpu.memory_space<vmem>>, %arg6: memref<2x32x32xf32, #tpu.memory_space<vmem>>, %arg7: memref<2x1x32xf32, #tpu.memory_space<vmem>>, %arg8: memref<2x1x32xf32, #tpu.memory_space<vmem>>, %arg9: memref<2x1x32xf32, #tpu.memory_space<vmem>>, %arg10: memref<2x32x64xf32, #tpu.memory_space<vmem>>, %arg11: memref<2x1x64xf32, #tpu.memory_space<vmem>>, %arg12: memref<2x64x32xf32, #tpu.memory_space<vmem>>, %arg13: memref<2x1x32xf32, #tpu.memory_space<vmem>>, %arg14: memref<1x32xf32, #tpu.memory_space<vmem>>, %arg15: memref<1x32xf32, #tpu.memory_space<vmem>>, %arg16: memref<32x128xf32, #tpu.memory_space<vmem>>, %arg17: memref<8x32xf32, #tpu.memory_space<vmem>>, %arg18: memref<8x128xf32, #tpu.memory_space<vmem>>) attributes {dimension_semantics = [#tpu.dimension_semantics<parallel>], iteration_bounds = array<i64: 2>, scalar_prefetch = 0 : i64, scratch_operands = 0 : i64, tpu.core_type = #tpu.core_type<tc>, window_params = [{transform_indices = @transform_0, window_bounds = array<i64: 8, 32>}, {pipeline_mode = #tpu.pipeline_mode<synchronous>, transform_indices = @transform_1, window_bounds = array<i64: 2, 1, 32>}, {pipeline_mode = #tpu.pipeline_mode<synchronous>, transform_indices = @transform_2, window_bounds = array<i64: 2, 1, 32>}, {pipeline_mode = #tpu.pipeline_mode<synchronous>, transform_indices = @transform_3, window_bounds = array<i64: 2, 32, 96>}, {pipeline_mode = #tpu.pipeline_mode<synchronous>, transform_indices = @transform_4, window_bounds = array<i64: 2, 1, 96>}, {pipeline_mode = #tpu.pipeline_mode<synchronous>, transform_indices = @transform_5, window_bounds = array<i64: 2, 32, 32>}, {pipeline_mode = #tpu.pipeline_mode<synchronous>, transform_indices = @transform_6, window_bounds = array<i64: 2, 1, 32>}, {pipeline_mode = #tpu.pipeline_mode<synchronous>, transform_indices = @transform_7, window_bounds = array<i64: 2, 1, 32>}, {pipeline_mode = #tpu.pipeline_mode<synchronous>, transform_indices = @transform_8, window_bounds = array<i64: 2, 1, 32>}, {pipeline_mode = #tpu.pipeline_mode<synchronous>, transform_indices = @transform_9, window_bounds = array<i64: 2, 32, 64>}, {pipeline_mode = #tpu.pipeline_mode<synchronous>, transform_indices = @transform_10, window_bounds = array<i64: 2, 1, 64>}, {pipeline_mode = #tpu.pipeline_mode<synchronous>, transform_indices = @transform_11, window_bounds = array<i64: 2, 64, 32>}, {pipeline_mode = #tpu.pipeline_mode<synchronous>, transform_indices = @transform_12, window_bounds = array<i64: 2, 1, 32>}, {pipeline_mode = #tpu.pipeline_mode<synchronous>, transform_indices = @transform_13, window_bounds = array<i64: 1, 32>}, {pipeline_mode = #tpu.pipeline_mode<synchronous>, transform_indices = @transform_14, window_bounds = array<i64: 1, 32>}, {pipeline_mode = #tpu.pipeline_mode<synchronous>, transform_indices = @transform_15, window_bounds = array<i64: 32, 128>}, {transform_indices = @transform_16, window_bounds = array<i64: 8, 32>}, {transform_indices = @transform_17, window_bounds = array<i64: 8, 128>}]} {
    %c0 = arith.constant 0 : index
    %c0_0 = arith.constant 0 : index
    %0 = vector.load %arg1[%c0, %c0_0] : memref<8x32xf32, #tpu.memory_space<vmem>>, vector<8x32xf32>
    %1 = tpu.iota {dimensions = array<i32: 0>} : vector<8x8xi32>
    %2 = tpu.iota {dimensions = array<i32: 1>} : vector<8x8xi32>
    %3 = arith.cmpi sle, %2, %1 : vector<8x8xi32>
    %c0_1 = arith.constant 0 : index
    %c0_2 = arith.constant 0 : index
    %c0_3 = arith.constant 0 : index
    %4 = vector.load %arg2[%c0_1, %c0_2, %c0_3] : memref<2x1x32xf32, #tpu.memory_space<vmem>>, vector<1x1x32xf32>
    %5 = vector.shape_cast %4 : vector<1x1x32xf32> to vector<1x32xf32>
    %c0_4 = arith.constant 0 : index
    %c0_5 = arith.constant 0 : index
    %c0_6 = arith.constant 0 : index
    %6 = vector.load %arg3[%c0_4, %c0_5, %c0_6] : memref<2x1x32xf32, #tpu.memory_space<vmem>>, vector<1x1x32xf32>
    %7 = vector.shape_cast %6 : vector<1x1x32xf32> to vector<1x32xf32>
    %cst = arith.constant dense<0.000000e+00> : vector<8xf32>
    %8 = vector.multi_reduction <add>, %0, %cst [1] : vector<8x32xf32> to vector<8xf32>
    %9 = vector.shape_cast %8 : vector<8xf32> to vector<8x1xf32>
    %cst_7 = arith.constant 3.200000e+01 : f32
    %10 = vector.broadcast %cst_7 : f32 to vector<8x1xf32>
    %11 = arith.divf %9, %10 : vector<8x1xf32>
    %12 = vector.broadcast %11 : vector<8x1xf32> to vector<8x32xf32>
    %13 = arith.subf %0, %12 : vector<8x32xf32>
    %14 = arith.mulf %13, %13 : vector<8x32xf32>
    %cst_8 = arith.constant dense<0.000000e+00> : vector<8xf32>
    %15 = vector.multi_reduction <add>, %14, %cst_8 [1] : vector<8x32xf32> to vector<8xf32>
    %16 = vector.shape_cast %15 : vector<8xf32> to vector<8x1xf32>
    %cst_9 = arith.constant 3.200000e+01 : f32
    %17 = vector.broadcast %cst_9 : f32 to vector<8x1xf32>
    %18 = arith.divf %16, %17 : vector<8x1xf32>
    %19 = vector.broadcast %11 : vector<8x1xf32> to vector<8x32xf32>
    %20 = arith.subf %0, %19 : vector<8x32xf32>
    %cst_10 = arith.constant 9.99999974E-6 : f32
    %21 = vector.broadcast %cst_10 : f32 to vector<8x1xf32>
    %22 = arith.addf %18, %21 : vector<8x1xf32>
    %23 = math.rsqrt %22 : vector<8x1xf32>
    %24 = vector.broadcast %23 : vector<8x1xf32> to vector<8x32xf32>
    %25 = arith.mulf %20, %24 : vector<8x32xf32>
    %26 = vector.broadcast %5 : vector<1x32xf32> to vector<8x32xf32>
    %27 = arith.mulf %25, %26 : vector<8x32xf32>
    %28 = vector.broadcast %7 : vector<1x32xf32> to vector<8x32xf32>
    %29 = arith.addf %27, %28 : vector<8x32xf32>
    %c0_11 = arith.constant 0 : index
    %c0_12 = arith.constant 0 : index
    %c0_13 = arith.constant 0 : index
    %30 = vector.load %arg4[%c0_11, %c0_12, %c0_13] : memref<2x32x96xf32, #tpu.memory_space<vmem>>, vector<1x32x96xf32>
    %31 = vector.shape_cast %30 : vector<1x32x96xf32> to vector<32x96xf32>
    %cst_14 = arith.constant dense<0.000000e+00> : vector<8x96xf32>
    %32 = tpu.matmul %29, %31, %cst_14 {dimension_numbers = #tpu.dot_dimension_numbers<[1], [0], [0], [1], [0, 0, 1, 1], [], []>} : vector<8x32xf32>, vector<32x96xf32>, vector<8x96xf32> -> vector<8x96xf32>
    %c0_15 = arith.constant 0 : index
    %c0_16 = arith.constant 0 : index
    %c0_17 = arith.constant 0 : index
    %33 = vector.load %arg5[%c0_15, %c0_16, %c0_17] : memref<2x1x96xf32, #tpu.memory_space<vmem>>, vector<1x1x96xf32>
    %34 = vector.shape_cast %33 : vector<1x1x96xf32> to vector<1x96xf32>
    %35 = vector.broadcast %34 : vector<1x96xf32> to vector<8x96xf32>
    %36 = arith.addf %32, %35 : vector<8x96xf32>
    %37 = vector.extract_strided_slice %36 {offsets = [0, 0], sizes = [8, 16], strides = [1, 1]} : vector<8x96xf32> to vector<8x16xf32>
    %cst_18 = arith.constant 2.500000e-01 : f32
    %38 = vector.broadcast %cst_18 : f32 to vector<8x16xf32>
    %39 = arith.mulf %37, %38 : vector<8x16xf32>
    %40 = vector.extract_strided_slice %36 {offsets = [0, 32], sizes = [8, 16], strides = [1, 1]} : vector<8x96xf32> to vector<8x16xf32>
    %41 = vector.extract_strided_slice %36 {offsets = [0, 64], sizes = [8, 16], strides = [1, 1]} : vector<8x96xf32> to vector<8x16xf32>
    %42 = tpu.transpose %40, [1, 0] : vector<8x16xf32> -> vector<16x8xf32>
    %cst_19 = arith.constant dense<0.000000e+00> : vector<8x8xf32>
    %43 = tpu.matmul %39, %42, %cst_19 {dimension_numbers = #tpu.dot_dimension_numbers<[1], [0], [0], [1], [0, 0, 1, 1], [], []>} : vector<8x16xf32>, vector<16x8xf32>, vector<8x8xf32> -> vector<8x8xf32>
    %cst_20 = arith.constant -1.000000e+30 : f32
    %44 = vector.broadcast %cst_20 : f32 to vector<8x8xf32>
    %45 = arith.select %3, %43, %44 : vector<8x8xi1>, vector<8x8xf32>
    %cst_21 = arith.constant dense<0xFF800000> : vector<8xf32>
    %46 = vector.multi_reduction <maximumf>, %45, %cst_21 [1] : vector<8x8xf32> to vector<8xf32>
    %47 = vector.shape_cast %46 : vector<8xf32> to vector<8x1xf32>
    %48 = vector.broadcast %47 : vector<8x1xf32> to vector<8x8xf32>
    %49 = arith.subf %45, %48 : vector<8x8xf32>
    %50 = math.exp %49 : vector<8x8xf32>
    %cst_22 = arith.constant dense<0.000000e+00> : vector<8xf32>
    %51 = vector.multi_reduction <add>, %50, %cst_22 [1] : vector<8x8xf32> to vector<8xf32>
    %52 = vector.shape_cast %51 : vector<8xf32> to vector<8x1xf32>
    %53 = tpu.reciprocal %52 {approx = true} : vector<8x1xf32> -> vector<8x1xf32>
    %54 = vector.broadcast %53 : vector<8x1xf32> to vector<8x8xf32>
    %55 = arith.mulf %50, %54 : vector<8x8xf32>
    %cst_23 = arith.constant dense<0.000000e+00> : vector<8x16xf32>
    %56 = tpu.matmul %55, %41, %cst_23 {dimension_numbers = #tpu.dot_dimension_numbers<[1], [0], [0], [1], [0, 0, 1, 1], [], []>} : vector<8x8xf32>, vector<8x16xf32>, vector<8x16xf32> -> vector<8x16xf32>
    %57 = vector.extract_strided_slice %36 {offsets = [0, 16], sizes = [8, 16], strides = [1, 1]} : vector<8x96xf32> to vector<8x16xf32>
    %cst_24 = arith.constant 2.500000e-01 : f32
    %58 = vector.broadcast %cst_24 : f32 to vector<8x16xf32>
    %59 = arith.mulf %57, %58 : vector<8x16xf32>
    %60 = vector.extract_strided_slice %36 {offsets = [0, 48], sizes = [8, 16], strides = [1, 1]} : vector<8x96xf32> to vector<8x16xf32>
    %61 = vector.extract_strided_slice %36 {offsets = [0, 80], sizes = [8, 16], strides = [1, 1]} : vector<8x96xf32> to vector<8x16xf32>
    %62 = tpu.transpose %60, [1, 0] : vector<8x16xf32> -> vector<16x8xf32>
    %cst_25 = arith.constant dense<0.000000e+00> : vector<8x8xf32>
    %63 = tpu.matmul %59, %62, %cst_25 {dimension_numbers = #tpu.dot_dimension_numbers<[1], [0], [0], [1], [0, 0, 1, 1], [], []>} : vector<8x16xf32>, vector<16x8xf32>, vector<8x8xf32> -> vector<8x8xf32>
    %cst_26 = arith.constant -1.000000e+30 : f32
    %64 = vector.broadcast %cst_26 : f32 to vector<8x8xf32>
    %65 = arith.select %3, %63, %64 : vector<8x8xi1>, vector<8x8xf32>
    %cst_27 = arith.constant dense<0xFF800000> : vector<8xf32>
    %66 = vector.multi_reduction <maximumf>, %65, %cst_27 [1] : vector<8x8xf32> to vector<8xf32>
    %67 = vector.shape_cast %66 : vector<8xf32> to vector<8x1xf32>
    %68 = vector.broadcast %67 : vector<8x1xf32> to vector<8x8xf32>
    %69 = arith.subf %65, %68 : vector<8x8xf32>
    %70 = math.exp %69 : vector<8x8xf32>
    %cst_28 = arith.constant dense<0.000000e+00> : vector<8xf32>
    %71 = vector.multi_reduction <add>, %70, %cst_28 [1] : vector<8x8xf32> to vector<8xf32>
    %72 = vector.shape_cast %71 : vector<8xf32> to vector<8x1xf32>
    %73 = tpu.reciprocal %72 {approx = true} : vector<8x1xf32> -> vector<8x1xf32>
    %74 = vector.broadcast %73 : vector<8x1xf32> to vector<8x8xf32>
    %75 = arith.mulf %70, %74 : vector<8x8xf32>
    %cst_29 = arith.constant dense<0.000000e+00> : vector<8x16xf32>
    %76 = tpu.matmul %75, %61, %cst_29 {dimension_numbers = #tpu.dot_dimension_numbers<[1], [0], [0], [1], [0, 0, 1, 1], [], []>} : vector<8x8xf32>, vector<8x16xf32>, vector<8x16xf32> -> vector<8x16xf32>
    %77 = tpu.concatenate %56, %76 in 1 : vector<8x16xf32>, vector<8x16xf32> -> vector<8x32xf32>
    %c0_30 = arith.constant 0 : index
    %c0_31 = arith.constant 0 : index
    %c0_32 = arith.constant 0 : index
    %78 = vector.load %arg6[%c0_30, %c0_31, %c0_32] : memref<2x32x32xf32, #tpu.memory_space<vmem>>, vector<1x32x32xf32>
    %79 = vector.shape_cast %78 : vector<1x32x32xf32> to vector<32x32xf32>
    %cst_33 = arith.constant dense<0.000000e+00> : vector<8x32xf32>
    %80 = tpu.matmul %77, %79, %cst_33 {dimension_numbers = #tpu.dot_dimension_numbers<[1], [0], [0], [1], [0, 0, 1, 1], [], []>} : vector<8x32xf32>, vector<32x32xf32>, vector<8x32xf32> -> vector<8x32xf32>
    %c0_34 = arith.constant 0 : index
    %c0_35 = arith.constant 0 : index
    %c0_36 = arith.constant 0 : index
    %81 = vector.load %arg7[%c0_34, %c0_35, %c0_36] : memref<2x1x32xf32, #tpu.memory_space<vmem>>, vector<1x1x32xf32>
    %82 = vector.shape_cast %81 : vector<1x1x32xf32> to vector<1x32xf32>
    %83 = vector.broadcast %82 : vector<1x32xf32> to vector<8x32xf32>
    %84 = arith.addf %80, %83 : vector<8x32xf32>
    %85 = arith.addf %0, %84 : vector<8x32xf32>
    %c0_37 = arith.constant 0 : index
    %c0_38 = arith.constant 0 : index
    %c0_39 = arith.constant 0 : index
    %86 = vector.load %arg8[%c0_37, %c0_38, %c0_39] : memref<2x1x32xf32, #tpu.memory_space<vmem>>, vector<1x1x32xf32>
    %87 = vector.shape_cast %86 : vector<1x1x32xf32> to vector<1x32xf32>
    %c0_40 = arith.constant 0 : index
    %c0_41 = arith.constant 0 : index
    %c0_42 = arith.constant 0 : index
    %88 = vector.load %arg9[%c0_40, %c0_41, %c0_42] : memref<2x1x32xf32, #tpu.memory_space<vmem>>, vector<1x1x32xf32>
    %89 = vector.shape_cast %88 : vector<1x1x32xf32> to vector<1x32xf32>
    %cst_43 = arith.constant dense<0.000000e+00> : vector<8xf32>
    %90 = vector.multi_reduction <add>, %85, %cst_43 [1] : vector<8x32xf32> to vector<8xf32>
    %91 = vector.shape_cast %90 : vector<8xf32> to vector<8x1xf32>
    %cst_44 = arith.constant 3.200000e+01 : f32
    %92 = vector.broadcast %cst_44 : f32 to vector<8x1xf32>
    %93 = arith.divf %91, %92 : vector<8x1xf32>
    %94 = vector.broadcast %93 : vector<8x1xf32> to vector<8x32xf32>
    %95 = arith.subf %85, %94 : vector<8x32xf32>
    %96 = arith.mulf %95, %95 : vector<8x32xf32>
    %cst_45 = arith.constant dense<0.000000e+00> : vector<8xf32>
    %97 = vector.multi_reduction <add>, %96, %cst_45 [1] : vector<8x32xf32> to vector<8xf32>
    %98 = vector.shape_cast %97 : vector<8xf32> to vector<8x1xf32>
    %cst_46 = arith.constant 3.200000e+01 : f32
    %99 = vector.broadcast %cst_46 : f32 to vector<8x1xf32>
    %100 = arith.divf %98, %99 : vector<8x1xf32>
    %101 = vector.broadcast %93 : vector<8x1xf32> to vector<8x32xf32>
    %102 = arith.subf %85, %101 : vector<8x32xf32>
    %cst_47 = arith.constant 9.99999974E-6 : f32
    %103 = vector.broadcast %cst_47 : f32 to vector<8x1xf32>
    %104 = arith.addf %100, %103 : vector<8x1xf32>
    %105 = math.rsqrt %104 : vector<8x1xf32>
    %106 = vector.broadcast %105 : vector<8x1xf32> to vector<8x32xf32>
    %107 = arith.mulf %102, %106 : vector<8x32xf32>
    %108 = vector.broadcast %87 : vector<1x32xf32> to vector<8x32xf32>
    %109 = arith.mulf %107, %108 : vector<8x32xf32>
    %110 = vector.broadcast %89 : vector<1x32xf32> to vector<8x32xf32>
    %111 = arith.addf %109, %110 : vector<8x32xf32>
    %c0_48 = arith.constant 0 : index
    %c0_49 = arith.constant 0 : index
    %c0_50 = arith.constant 0 : index
    %112 = vector.load %arg10[%c0_48, %c0_49, %c0_50] : memref<2x32x64xf32, #tpu.memory_space<vmem>>, vector<1x32x64xf32>
    %113 = vector.shape_cast %112 : vector<1x32x64xf32> to vector<32x64xf32>
    %cst_51 = arith.constant dense<0.000000e+00> : vector<8x64xf32>
    %114 = tpu.matmul %111, %113, %cst_51 {dimension_numbers = #tpu.dot_dimension_numbers<[1], [0], [0], [1], [0, 0, 1, 1], [], []>} : vector<8x32xf32>, vector<32x64xf32>, vector<8x64xf32> -> vector<8x64xf32>
    %c0_52 = arith.constant 0 : index
    %c0_53 = arith.constant 0 : index
    %c0_54 = arith.constant 0 : index
    %115 = vector.load %arg11[%c0_52, %c0_53, %c0_54] : memref<2x1x64xf32, #tpu.memory_space<vmem>>, vector<1x1x64xf32>
    %116 = vector.shape_cast %115 : vector<1x1x64xf32> to vector<1x64xf32>
    %117 = vector.broadcast %116 : vector<1x64xf32> to vector<8x64xf32>
    %118 = arith.addf %114, %117 : vector<8x64xf32>
    %cst_55 = arith.constant 0.000000e+00 : f32
    %119 = vector.broadcast %cst_55 : f32 to vector<8x64xf32>
    %120 = arith.maximumf %118, %119 : vector<8x64xf32>
    %c0_56 = arith.constant 0 : index
    %c0_57 = arith.constant 0 : index
    %c0_58 = arith.constant 0 : index
    %121 = vector.load %arg12[%c0_56, %c0_57, %c0_58] : memref<2x64x32xf32, #tpu.memory_space<vmem>>, vector<1x64x32xf32>
    %122 = vector.shape_cast %121 : vector<1x64x32xf32> to vector<64x32xf32>
    %cst_59 = arith.constant dense<0.000000e+00> : vector<8x32xf32>
    %123 = tpu.matmul %120, %122, %cst_59 {dimension_numbers = #tpu.dot_dimension_numbers<[1], [0], [0], [1], [0, 0, 1, 1], [], []>} : vector<8x64xf32>, vector<64x32xf32>, vector<8x32xf32> -> vector<8x32xf32>
    %c0_60 = arith.constant 0 : index
    %c0_61 = arith.constant 0 : index
    %c0_62 = arith.constant 0 : index
    %124 = vector.load %arg13[%c0_60, %c0_61, %c0_62] : memref<2x1x32xf32, #tpu.memory_space<vmem>>, vector<1x1x32xf32>
    %125 = vector.shape_cast %124 : vector<1x1x32xf32> to vector<1x32xf32>
    %126 = vector.broadcast %125 : vector<1x32xf32> to vector<8x32xf32>
    %127 = arith.addf %123, %126 : vector<8x32xf32>
    %128 = arith.addf %85, %127 : vector<8x32xf32>
    %c1 = arith.constant 1 : index
    %c0_63 = arith.constant 0 : index
    %c0_64 = arith.constant 0 : index
    %129 = vector.load %arg2[%c1, %c0_63, %c0_64] : memref<2x1x32xf32, #tpu.memory_space<vmem>>, vector<1x1x32xf32>
    %130 = vector.shape_cast %129 : vector<1x1x32xf32> to vector<1x32xf32>
    %c1_65 = arith.constant 1 : index
    %c0_66 = arith.constant 0 : index
    %c0_67 = arith.constant 0 : index
    %131 = vector.load %arg3[%c1_65, %c0_66, %c0_67] : memref<2x1x32xf32, #tpu.memory_space<vmem>>, vector<1x1x32xf32>
    %132 = vector.shape_cast %131 : vector<1x1x32xf32> to vector<1x32xf32>
    %cst_68 = arith.constant dense<0.000000e+00> : vector<8xf32>
    %133 = vector.multi_reduction <add>, %128, %cst_68 [1] : vector<8x32xf32> to vector<8xf32>
    %134 = vector.shape_cast %133 : vector<8xf32> to vector<8x1xf32>
    %cst_69 = arith.constant 3.200000e+01 : f32
    %135 = vector.broadcast %cst_69 : f32 to vector<8x1xf32>
    %136 = arith.divf %134, %135 : vector<8x1xf32>
    %137 = vector.broadcast %136 : vector<8x1xf32> to vector<8x32xf32>
    %138 = arith.subf %128, %137 : vector<8x32xf32>
    %139 = arith.mulf %138, %138 : vector<8x32xf32>
    %cst_70 = arith.constant dense<0.000000e+00> : vector<8xf32>
    %140 = vector.multi_reduction <add>, %139, %cst_70 [1] : vector<8x32xf32> to vector<8xf32>
    %141 = vector.shape_cast %140 : vector<8xf32> to vector<8x1xf32>
    %cst_71 = arith.constant 3.200000e+01 : f32
    %142 = vector.broadcast %cst_71 : f32 to vector<8x1xf32>
    %143 = arith.divf %141, %142 : vector<8x1xf32>
    %144 = vector.broadcast %136 : vector<8x1xf32> to vector<8x32xf32>
    %145 = arith.subf %128, %144 : vector<8x32xf32>
    %cst_72 = arith.constant 9.99999974E-6 : f32
    %146 = vector.broadcast %cst_72 : f32 to vector<8x1xf32>
    %147 = arith.addf %143, %146 : vector<8x1xf32>
    %148 = math.rsqrt %147 : vector<8x1xf32>
    %149 = vector.broadcast %148 : vector<8x1xf32> to vector<8x32xf32>
    %150 = arith.mulf %145, %149 : vector<8x32xf32>
    %151 = vector.broadcast %130 : vector<1x32xf32> to vector<8x32xf32>
    %152 = arith.mulf %150, %151 : vector<8x32xf32>
    %153 = vector.broadcast %132 : vector<1x32xf32> to vector<8x32xf32>
    %154 = arith.addf %152, %153 : vector<8x32xf32>
    %c1_73 = arith.constant 1 : index
    %c0_74 = arith.constant 0 : index
    %c0_75 = arith.constant 0 : index
    %155 = vector.load %arg4[%c1_73, %c0_74, %c0_75] : memref<2x32x96xf32, #tpu.memory_space<vmem>>, vector<1x32x96xf32>
    %156 = vector.shape_cast %155 : vector<1x32x96xf32> to vector<32x96xf32>
    %cst_76 = arith.constant dense<0.000000e+00> : vector<8x96xf32>
    %157 = tpu.matmul %154, %156, %cst_76 {dimension_numbers = #tpu.dot_dimension_numbers<[1], [0], [0], [1], [0, 0, 1, 1], [], []>} : vector<8x32xf32>, vector<32x96xf32>, vector<8x96xf32> -> vector<8x96xf32>
    %c1_77 = arith.constant 1 : index
    %c0_78 = arith.constant 0 : index
    %c0_79 = arith.constant 0 : index
    %158 = vector.load %arg5[%c1_77, %c0_78, %c0_79] : memref<2x1x96xf32, #tpu.memory_space<vmem>>, vector<1x1x96xf32>
    %159 = vector.shape_cast %158 : vector<1x1x96xf32> to vector<1x96xf32>
    %160 = vector.broadcast %159 : vector<1x96xf32> to vector<8x96xf32>
    %161 = arith.addf %157, %160 : vector<8x96xf32>
    %162 = vector.extract_strided_slice %161 {offsets = [0, 0], sizes = [8, 16], strides = [1, 1]} : vector<8x96xf32> to vector<8x16xf32>
    %cst_80 = arith.constant 2.500000e-01 : f32
    %163 = vector.broadcast %cst_80 : f32 to vector<8x16xf32>
    %164 = arith.mulf %162, %163 : vector<8x16xf32>
    %165 = vector.extract_strided_slice %161 {offsets = [0, 32], sizes = [8, 16], strides = [1, 1]} : vector<8x96xf32> to vector<8x16xf32>
    %166 = vector.extract_strided_slice %161 {offsets = [0, 64], sizes = [8, 16], strides = [1, 1]} : vector<8x96xf32> to vector<8x16xf32>
    %167 = tpu.transpose %165, [1, 0] : vector<8x16xf32> -> vector<16x8xf32>
    %cst_81 = arith.constant dense<0.000000e+00> : vector<8x8xf32>
    %168 = tpu.matmul %164, %167, %cst_81 {dimension_numbers = #tpu.dot_dimension_numbers<[1], [0], [0], [1], [0, 0, 1, 1], [], []>} : vector<8x16xf32>, vector<16x8xf32>, vector<8x8xf32> -> vector<8x8xf32>
    %cst_82 = arith.constant -1.000000e+30 : f32
    %169 = vector.broadcast %cst_82 : f32 to vector<8x8xf32>
    %170 = arith.select %3, %168, %169 : vector<8x8xi1>, vector<8x8xf32>
    %cst_83 = arith.constant dense<0xFF800000> : vector<8xf32>
    %171 = vector.multi_reduction <maximumf>, %170, %cst_83 [1] : vector<8x8xf32> to vector<8xf32>
    %172 = vector.shape_cast %171 : vector<8xf32> to vector<8x1xf32>
    %173 = vector.broadcast %172 : vector<8x1xf32> to vector<8x8xf32>
    %174 = arith.subf %170, %173 : vector<8x8xf32>
    %175 = math.exp %174 : vector<8x8xf32>
    %cst_84 = arith.constant dense<0.000000e+00> : vector<8xf32>
    %176 = vector.multi_reduction <add>, %175, %cst_84 [1] : vector<8x8xf32> to vector<8xf32>
    %177 = vector.shape_cast %176 : vector<8xf32> to vector<8x1xf32>
    %178 = tpu.reciprocal %177 {approx = true} : vector<8x1xf32> -> vector<8x1xf32>
    %179 = vector.broadcast %178 : vector<8x1xf32> to vector<8x8xf32>
    %180 = arith.mulf %175, %179 : vector<8x8xf32>
    %cst_85 = arith.constant dense<0.000000e+00> : vector<8x16xf32>
    %181 = tpu.matmul %180, %166, %cst_85 {dimension_numbers = #tpu.dot_dimension_numbers<[1], [0], [0], [1], [0, 0, 1, 1], [], []>} : vector<8x8xf32>, vector<8x16xf32>, vector<8x16xf32> -> vector<8x16xf32>
    %182 = vector.extract_strided_slice %161 {offsets = [0, 16], sizes = [8, 16], strides = [1, 1]} : vector<8x96xf32> to vector<8x16xf32>
    %cst_86 = arith.constant 2.500000e-01 : f32
    %183 = vector.broadcast %cst_86 : f32 to vector<8x16xf32>
    %184 = arith.mulf %182, %183 : vector<8x16xf32>
    %185 = vector.extract_strided_slice %161 {offsets = [0, 48], sizes = [8, 16], strides = [1, 1]} : vector<8x96xf32> to vector<8x16xf32>
    %186 = vector.extract_strided_slice %161 {offsets = [0, 80], sizes = [8, 16], strides = [1, 1]} : vector<8x96xf32> to vector<8x16xf32>
    %187 = tpu.transpose %185, [1, 0] : vector<8x16xf32> -> vector<16x8xf32>
    %cst_87 = arith.constant dense<0.000000e+00> : vector<8x8xf32>
    %188 = tpu.matmul %184, %187, %cst_87 {dimension_numbers = #tpu.dot_dimension_numbers<[1], [0], [0], [1], [0, 0, 1, 1], [], []>} : vector<8x16xf32>, vector<16x8xf32>, vector<8x8xf32> -> vector<8x8xf32>
    %cst_88 = arith.constant -1.000000e+30 : f32
    %189 = vector.broadcast %cst_88 : f32 to vector<8x8xf32>
    %190 = arith.select %3, %188, %189 : vector<8x8xi1>, vector<8x8xf32>
    %cst_89 = arith.constant dense<0xFF800000> : vector<8xf32>
    %191 = vector.multi_reduction <maximumf>, %190, %cst_89 [1] : vector<8x8xf32> to vector<8xf32>
    %192 = vector.shape_cast %191 : vector<8xf32> to vector<8x1xf32>
    %193 = vector.broadcast %192 : vector<8x1xf32> to vector<8x8xf32>
    %194 = arith.subf %190, %193 : vector<8x8xf32>
    %195 = math.exp %194 : vector<8x8xf32>
    %cst_90 = arith.constant dense<0.000000e+00> : vector<8xf32>
    %196 = vector.multi_reduction <add>, %195, %cst_90 [1] : vector<8x8xf32> to vector<8xf32>
    %197 = vector.shape_cast %196 : vector<8xf32> to vector<8x1xf32>
    %198 = tpu.reciprocal %197 {approx = true} : vector<8x1xf32> -> vector<8x1xf32>
    %199 = vector.broadcast %198 : vector<8x1xf32> to vector<8x8xf32>
    %200 = arith.mulf %195, %199 : vector<8x8xf32>
    %cst_91 = arith.constant dense<0.000000e+00> : vector<8x16xf32>
    %201 = tpu.matmul %200, %186, %cst_91 {dimension_numbers = #tpu.dot_dimension_numbers<[1], [0], [0], [1], [0, 0, 1, 1], [], []>} : vector<8x8xf32>, vector<8x16xf32>, vector<8x16xf32> -> vector<8x16xf32>
    %202 = tpu.concatenate %181, %201 in 1 : vector<8x16xf32>, vector<8x16xf32> -> vector<8x32xf32>
    %c1_92 = arith.constant 1 : index
    %c0_93 = arith.constant 0 : index
    %c0_94 = arith.constant 0 : index
    %203 = vector.load %arg6[%c1_92, %c0_93, %c0_94] : memref<2x32x32xf32, #tpu.memory_space<vmem>>, vector<1x32x32xf32>
    %204 = vector.shape_cast %203 : vector<1x32x32xf32> to vector<32x32xf32>
    %cst_95 = arith.constant dense<0.000000e+00> : vector<8x32xf32>
    %205 = tpu.matmul %202, %204, %cst_95 {dimension_numbers = #tpu.dot_dimension_numbers<[1], [0], [0], [1], [0, 0, 1, 1], [], []>} : vector<8x32xf32>, vector<32x32xf32>, vector<8x32xf32> -> vector<8x32xf32>
    %c1_96 = arith.constant 1 : index
    %c0_97 = arith.constant 0 : index
    %c0_98 = arith.constant 0 : index
    %206 = vector.load %arg7[%c1_96, %c0_97, %c0_98] : memref<2x1x32xf32, #tpu.memory_space<vmem>>, vector<1x1x32xf32>
    %207 = vector.shape_cast %206 : vector<1x1x32xf32> to vector<1x32xf32>
    %208 = vector.broadcast %207 : vector<1x32xf32> to vector<8x32xf32>
    %209 = arith.addf %205, %208 : vector<8x32xf32>
    %210 = arith.addf %128, %209 : vector<8x32xf32>
    %c1_99 = arith.constant 1 : index
    %c0_100 = arith.constant 0 : index
    %c0_101 = arith.constant 0 : index
    %211 = vector.load %arg8[%c1_99, %c0_100, %c0_101] : memref<2x1x32xf32, #tpu.memory_space<vmem>>, vector<1x1x32xf32>
    %212 = vector.shape_cast %211 : vector<1x1x32xf32> to vector<1x32xf32>
    %c1_102 = arith.constant 1 : index
    %c0_103 = arith.constant 0 : index
    %c0_104 = arith.constant 0 : index
    %213 = vector.load %arg9[%c1_102, %c0_103, %c0_104] : memref<2x1x32xf32, #tpu.memory_space<vmem>>, vector<1x1x32xf32>
    %214 = vector.shape_cast %213 : vector<1x1x32xf32> to vector<1x32xf32>
    %cst_105 = arith.constant dense<0.000000e+00> : vector<8xf32>
    %215 = vector.multi_reduction <add>, %210, %cst_105 [1] : vector<8x32xf32> to vector<8xf32>
    %216 = vector.shape_cast %215 : vector<8xf32> to vector<8x1xf32>
    %cst_106 = arith.constant 3.200000e+01 : f32
    %217 = vector.broadcast %cst_106 : f32 to vector<8x1xf32>
    %218 = arith.divf %216, %217 : vector<8x1xf32>
    %219 = vector.broadcast %218 : vector<8x1xf32> to vector<8x32xf32>
    %220 = arith.subf %210, %219 : vector<8x32xf32>
    %221 = arith.mulf %220, %220 : vector<8x32xf32>
    %cst_107 = arith.constant dense<0.000000e+00> : vector<8xf32>
    %222 = vector.multi_reduction <add>, %221, %cst_107 [1] : vector<8x32xf32> to vector<8xf32>
    %223 = vector.shape_cast %222 : vector<8xf32> to vector<8x1xf32>
    %cst_108 = arith.constant 3.200000e+01 : f32
    %224 = vector.broadcast %cst_108 : f32 to vector<8x1xf32>
    %225 = arith.divf %223, %224 : vector<8x1xf32>
    %226 = vector.broadcast %218 : vector<8x1xf32> to vector<8x32xf32>
    %227 = arith.subf %210, %226 : vector<8x32xf32>
    %cst_109 = arith.constant 9.99999974E-6 : f32
    %228 = vector.broadcast %cst_109 : f32 to vector<8x1xf32>
    %229 = arith.addf %225, %228 : vector<8x1xf32>
    %230 = math.rsqrt %229 : vector<8x1xf32>
    %231 = vector.broadcast %230 : vector<8x1xf32> to vector<8x32xf32>
    %232 = arith.mulf %227, %231 : vector<8x32xf32>
    %233 = vector.broadcast %212 : vector<1x32xf32> to vector<8x32xf32>
    %234 = arith.mulf %232, %233 : vector<8x32xf32>
    %235 = vector.broadcast %214 : vector<1x32xf32> to vector<8x32xf32>
    %236 = arith.addf %234, %235 : vector<8x32xf32>
    %c1_110 = arith.constant 1 : index
    %c0_111 = arith.constant 0 : index
    %c0_112 = arith.constant 0 : index
    %237 = vector.load %arg10[%c1_110, %c0_111, %c0_112] : memref<2x32x64xf32, #tpu.memory_space<vmem>>, vector<1x32x64xf32>
    %238 = vector.shape_cast %237 : vector<1x32x64xf32> to vector<32x64xf32>
    %cst_113 = arith.constant dense<0.000000e+00> : vector<8x64xf32>
    %239 = tpu.matmul %236, %238, %cst_113 {dimension_numbers = #tpu.dot_dimension_numbers<[1], [0], [0], [1], [0, 0, 1, 1], [], []>} : vector<8x32xf32>, vector<32x64xf32>, vector<8x64xf32> -> vector<8x64xf32>
    %c1_114 = arith.constant 1 : index
    %c0_115 = arith.constant 0 : index
    %c0_116 = arith.constant 0 : index
    %240 = vector.load %arg11[%c1_114, %c0_115, %c0_116] : memref<2x1x64xf32, #tpu.memory_space<vmem>>, vector<1x1x64xf32>
    %241 = vector.shape_cast %240 : vector<1x1x64xf32> to vector<1x64xf32>
    %242 = vector.broadcast %241 : vector<1x64xf32> to vector<8x64xf32>
    %243 = arith.addf %239, %242 : vector<8x64xf32>
    %cst_117 = arith.constant 0.000000e+00 : f32
    %244 = vector.broadcast %cst_117 : f32 to vector<8x64xf32>
    %245 = arith.maximumf %243, %244 : vector<8x64xf32>
    %c1_118 = arith.constant 1 : index
    %c0_119 = arith.constant 0 : index
    %c0_120 = arith.constant 0 : index
    %246 = vector.load %arg12[%c1_118, %c0_119, %c0_120] : memref<2x64x32xf32, #tpu.memory_space<vmem>>, vector<1x64x32xf32>
    %247 = vector.shape_cast %246 : vector<1x64x32xf32> to vector<64x32xf32>
    %cst_121 = arith.constant dense<0.000000e+00> : vector<8x32xf32>
    %248 = tpu.matmul %245, %247, %cst_121 {dimension_numbers = #tpu.dot_dimension_numbers<[1], [0], [0], [1], [0, 0, 1, 1], [], []>} : vector<8x64xf32>, vector<64x32xf32>, vector<8x32xf32> -> vector<8x32xf32>
    %c1_122 = arith.constant 1 : index
    %c0_123 = arith.constant 0 : index
    %c0_124 = arith.constant 0 : index
    %249 = vector.load %arg13[%c1_122, %c0_123, %c0_124] : memref<2x1x32xf32, #tpu.memory_space<vmem>>, vector<1x1x32xf32>
    %250 = vector.shape_cast %249 : vector<1x1x32xf32> to vector<1x32xf32>
    %251 = vector.broadcast %250 : vector<1x32xf32> to vector<8x32xf32>
    %252 = arith.addf %248, %251 : vector<8x32xf32>
    %253 = arith.addf %210, %252 : vector<8x32xf32>
    %c0_125 = arith.constant 0 : index
    %c0_126 = arith.constant 0 : index
    %254 = vector.load %arg14[%c0_125, %c0_126] : memref<1x32xf32, #tpu.memory_space<vmem>>, vector<1x32xf32>
    %c0_127 = arith.constant 0 : index
    %c0_128 = arith.constant 0 : index
    %255 = vector.load %arg15[%c0_127, %c0_128] : memref<1x32xf32, #tpu.memory_space<vmem>>, vector<1x32xf32>
    %cst_129 = arith.constant dense<0.000000e+00> : vector<8xf32>
    %256 = vector.multi_reduction <add>, %253, %cst_129 [1] : vector<8x32xf32> to vector<8xf32>
    %257 = vector.shape_cast %256 : vector<8xf32> to vector<8x1xf32>
    %cst_130 = arith.constant 3.200000e+01 : f32
    %258 = vector.broadcast %cst_130 : f32 to vector<8x1xf32>
    %259 = arith.divf %257, %258 : vector<8x1xf32>
    %260 = vector.broadcast %259 : vector<8x1xf32> to vector<8x32xf32>
    %261 = arith.subf %253, %260 : vector<8x32xf32>
    %262 = arith.mulf %261, %261 : vector<8x32xf32>
    %cst_131 = arith.constant dense<0.000000e+00> : vector<8xf32>
    %263 = vector.multi_reduction <add>, %262, %cst_131 [1] : vector<8x32xf32> to vector<8xf32>
    %264 = vector.shape_cast %263 : vector<8xf32> to vector<8x1xf32>
    %cst_132 = arith.constant 3.200000e+01 : f32
    %265 = vector.broadcast %cst_132 : f32 to vector<8x1xf32>
    %266 = arith.divf %264, %265 : vector<8x1xf32>
    %267 = vector.broadcast %259 : vector<8x1xf32> to vector<8x32xf32>
    %268 = arith.subf %253, %267 : vector<8x32xf32>
    %cst_133 = arith.constant 9.99999974E-6 : f32
    %269 = vector.broadcast %cst_133 : f32 to vector<8x1xf32>
    %270 = arith.addf %266, %269 : vector<8x1xf32>
    %271 = math.rsqrt %270 : vector<8x1xf32>
    %272 = vector.broadcast %271 : vector<8x1xf32> to vector<8x32xf32>
    %273 = arith.mulf %268, %272 : vector<8x32xf32>
    %274 = vector.broadcast %254 : vector<1x32xf32> to vector<8x32xf32>
    %275 = arith.mulf %273, %274 : vector<8x32xf32>
    %276 = vector.broadcast %255 : vector<1x32xf32> to vector<8x32xf32>
    %277 = arith.addf %275, %276 : vector<8x32xf32>
    %c0_134 = arith.constant 0 : index
    %c0_135 = arith.constant 0 : index
    %278 = vector.load %arg17[%c0_134, %c0_135] : memref<8x32xf32, #tpu.memory_space<vmem>>, vector<8x32xf32>
    tpu.vector_store %arg17[%c0_134, %c0_135], %277 {strides = array<i32>} : memref<8x32xf32, #tpu.memory_space<vmem>>, vector<8x32xf32>,
    %c0_136 = arith.constant 0 : index
    %c0_137 = arith.constant 0 : index
    %279 = vector.load %arg16[%c0_136, %c0_137] : memref<32x128xf32, #tpu.memory_space<vmem>>, vector<32x128xf32>
    %cst_138 = arith.constant dense<0.000000e+00> : vector<8x128xf32>
    %280 = tpu.matmul %277, %279, %cst_138 {dimension_numbers = #tpu.dot_dimension_numbers<[1], [0], [0], [1], [0, 0, 1, 1], [], []>} : vector<8x32xf32>, vector<32x128xf32>, vector<8x128xf32> -> vector<8x128xf32>
    %cst_139 = arith.constant dense<0xFF800000> : vector<8xf32>
    %281 = vector.multi_reduction <maximumf>, %280, %cst_139 [1] : vector<8x128xf32> to vector<8xf32>
    %282 = vector.shape_cast %281 : vector<8xf32> to vector<8x1xf32>
    %283 = vector.broadcast %282 : vector<8x1xf32> to vector<8x128xf32>
    %284 = arith.subf %280, %283 : vector<8x128xf32>
    %285 = math.exp %284 : vector<8x128xf32>
    %cst_140 = arith.constant dense<0.000000e+00> : vector<8xf32>
    %286 = vector.multi_reduction <add>, %285, %cst_140 [1] : vector<8x128xf32> to vector<8xf32>
    %287 = vector.shape_cast %286 : vector<8xf32> to vector<8x1xf32>
    %288 = tpu.reciprocal %287 {approx = true} : vector<8x1xf32> -> vector<8x1xf32>
    %289 = vector.broadcast %288 : vector<8x1xf32> to vector<8x128xf32>
    %290 = arith.mulf %285, %289 : vector<8x128xf32>
    %c0_141 = arith.constant 0 : index
    %c0_142 = arith.constant 0 : index
    %291 = vector.load %arg18[%c0_141, %c0_142] : memref<8x128xf32, #tpu.memory_space<vmem>>, vector<8x128xf32>
    tpu.vector_store %arg18[%c0_141, %c0_142], %290 {strides = array<i32>} : memref<8x128xf32, #tpu.memory_space<vmem>>, vector<8x128xf32>,
    return
  }
  func.func @transform_0(%arg0: i32) -> (i32, i32) {
    %c0_i32 = arith.constant 0 : i32
    %c0_i32_0 = arith.constant 0 : i32
    return %arg0, %c0_i32 : i32, i32
  }
  func.func @transform_1(%arg0: i32) -> (i32, i32, i32) {
    %c0_i32 = arith.constant 0 : i32
    %c0_i32_0 = arith.constant 0 : i32
    %c0_i32_1 = arith.constant 0 : i32
    %c0_i32_2 = arith.constant 0 : i32
    return %c0_i32, %c0_i32_0, %c0_i32_1 : i32, i32, i32
  }
  func.func @transform_2(%arg0: i32) -> (i32, i32, i32) {
    %c0_i32 = arith.constant 0 : i32
    %c0_i32_0 = arith.constant 0 : i32
    %c0_i32_1 = arith.constant 0 : i32
    %c0_i32_2 = arith.constant 0 : i32
    return %c0_i32, %c0_i32_0, %c0_i32_1 : i32, i32, i32
  }
  func.func @transform_3(%arg0: i32) -> (i32, i32, i32) {
    %c0_i32 = arith.constant 0 : i32
    %c0_i32_0 = arith.constant 0 : i32
    %c0_i32_1 = arith.constant 0 : i32
    %c0_i32_2 = arith.constant 0 : i32
    return %c0_i32, %c0_i32_0, %c0_i32_1 : i32, i32, i32
  }
  func.func @transform_4(%arg0: i32) -> (i32, i32, i32) {
    %c0_i32 = arith.constant 0 : i32
    %c0_i32_0 = arith.constant 0 : i32
    %c0_i32_1 = arith.constant 0 : i32
    %c0_i32_2 = arith.constant 0 : i32
    return %c0_i32, %c0_i32_0, %c0_i32_1 : i32, i32, i32
  }
  func.func @transform_5(%arg0: i32) -> (i32, i32, i32) {
    %c0_i32 = arith.constant 0 : i32
    %c0_i32_0 = arith.constant 0 : i32
    %c0_i32_1 = arith.constant 0 : i32
    %c0_i32_2 = arith.constant 0 : i32
    return %c0_i32, %c0_i32_0, %c0_i32_1 : i32, i32, i32
  }
  func.func @transform_6(%arg0: i32) -> (i32, i32, i32) {
    %c0_i32 = arith.constant 0 : i32
    %c0_i32_0 = arith.constant 0 : i32
    %c0_i32_1 = arith.constant 0 : i32
    %c0_i32_2 = arith.constant 0 : i32
    return %c0_i32, %c0_i32_0, %c0_i32_1 : i32, i32, i32
  }
  func.func @transform_7(%arg0: i32) -> (i32, i32, i32) {
    %c0_i32 = arith.constant 0 : i32
    %c0_i32_0 = arith.constant 0 : i32
    %c0_i32_1 = arith.constant 0 : i32
    %c0_i32_2 = arith.constant 0 : i32
    return %c0_i32, %c0_i32_0, %c0_i32_1 : i32, i32, i32
  }
  func.func @transform_8(%arg0: i32) -> (i32, i32, i32) {
    %c0_i32 = arith.constant 0 : i32
    %c0_i32_0 = arith.constant 0 : i32
    %c0_i32_1 = arith.constant 0 : i32
    %c0_i32_2 = arith.constant 0 : i32
    return %c0_i32, %c0_i32_0, %c0_i32_1 : i32, i32, i32
  }
  func.func @transform_9(%arg0: i32) -> (i32, i32, i32) {
    %c0_i32 = arith.constant 0 : i32
    %c0_i32_0 = arith.constant 0 : i32
    %c0_i32_1 = arith.constant 0 : i32
    %c0_i32_2 = arith.constant 0 : i32
    return %c0_i32, %c0_i32_0, %c0_i32_1 : i32, i32, i32
  }
  func.func @transform_10(%arg0: i32) -> (i32, i32, i32) {
    %c0_i32 = arith.constant 0 : i32
    %c0_i32_0 = arith.constant 0 : i32
    %c0_i32_1 = arith.constant 0 : i32
    %c0_i32_2 = arith.constant 0 : i32
    return %c0_i32, %c0_i32_0, %c0_i32_1 : i32, i32, i32
  }
  func.func @transform_11(%arg0: i32) -> (i32, i32, i32) {
    %c0_i32 = arith.constant 0 : i32
    %c0_i32_0 = arith.constant 0 : i32
    %c0_i32_1 = arith.constant 0 : i32
    %c0_i32_2 = arith.constant 0 : i32
    return %c0_i32, %c0_i32_0, %c0_i32_1 : i32, i32, i32
  }
  func.func @transform_12(%arg0: i32) -> (i32, i32, i32) {
    %c0_i32 = arith.constant 0 : i32
    %c0_i32_0 = arith.constant 0 : i32
    %c0_i32_1 = arith.constant 0 : i32
    %c0_i32_2 = arith.constant 0 : i32
    return %c0_i32, %c0_i32_0, %c0_i32_1 : i32, i32, i32
  }
  func.func @transform_13(%arg0: i32) -> (i32, i32) {
    %c0_i32 = arith.constant 0 : i32
    %c0_i32_0 = arith.constant 0 : i32
    %c0_i32_1 = arith.constant 0 : i32
    return %c0_i32, %c0_i32_0 : i32, i32
  }
  func.func @transform_14(%arg0: i32) -> (i32, i32) {
    %c0_i32 = arith.constant 0 : i32
    %c0_i32_0 = arith.constant 0 : i32
    %c0_i32_1 = arith.constant 0 : i32
    return %c0_i32, %c0_i32_0 : i32, i32
  }
  func.func @transform_15(%arg0: i32) -> (i32, i32) {
    %c0_i32 = arith.constant 0 : i32
    %c0_i32_0 = arith.constant 0 : i32
    %c0_i32_1 = arith.constant 0 : i32
    return %c0_i32, %c0_i32_0 : i32, i32
  }
  func.func @transform_16(%arg0: i32) -> (i32, i32) {
    %c0_i32 = arith.constant 0 : i32
    %c0_i32_0 = arith.constant 0 : i32
    return %arg0, %c0_i32 : i32, i32
  }
  func.func @transform_17(%arg0: i32) -> (i32, i32) {
    %c0_i32 = arith.constant 0 : i32
    %c0_i32_0 = arith.constant 0 : i32
    return %arg0, %c0_i32 : i32, i32
  }
}

</mosaic_0001>

<llo_original>
// kernel: coherence_forward.1
$region0: #{coherence_forward.1}
  #allocation0 [shape = 'u32[]', space=smem, size = 0x4, offset = 0x4, fixed_abs, tag = 'smem constant byte address 0x4 - core index']
  #allocation1 [shape = 'u32[72,128]{1,0:T(1,128)}', space=vmem, size = 0x9000, scoped, tag = 'internal scratch']
  %s0 = inlined_call_operand.vmem [shape: f32[16,32], index: 0, kind: input, shape index: {}]
  %s1 = inlined_call_operand.vmem [shape: f32[2,1,32], index: 1, kind: input, shape index: {}]
  %s2 = inlined_call_operand.vmem [shape: f32[2,1,32], index: 2, kind: input, shape index: {}]
  %s3 = inlined_call_operand.vmem [shape: f32[2,32,96], index: 3, kind: input, shape index: {}]
  %s4 = inlined_call_operand.vmem [shape: f32[2,1,96], index: 4, kind: input, shape index: {}]
  %s5 = inlined_call_operand.vmem [shape: f32[2,32,32], index: 5, kind: input, shape index: {}]
  %s6 = inlined_call_operand.vmem [shape: f32[2,1,32], index: 6, kind: input, shape index: {}]
  %s7 = inlined_call_operand.vmem [shape: f32[2,1,32], index: 7, kind: input, shape index: {}]
  %s8 = inlined_call_operand.vmem [shape: f32[2,1,32], index: 8, kind: input, shape index: {}]
  %s9 = inlined_call_operand.vmem [shape: f32[2,32,64], index: 9, kind: input, shape index: {}]
  %s10 = inlined_call_operand.vmem [shape: f32[2,1,64], index: 10, kind: input, shape index: {}]
  %s11 = inlined_call_operand.vmem [shape: f32[2,64,32], index: 11, kind: input, shape index: {}]
  %s12 = inlined_call_operand.vmem [shape: f32[2,1,32], index: 12, kind: input, shape index: {}]
  %s13 = inlined_call_operand.vmem [shape: f32[1,32], index: 13, kind: input, shape index: {}]
  %s14 = inlined_call_operand.vmem [shape: f32[1,32], index: 14, kind: input, shape index: {}]
  %s15 = inlined_call_operand.vmem [shape: f32[32,128], index: 15, kind: input, shape index: {}]
  %s16 = inlined_call_operand.hbm [shape: f32[16,32], index: 16, kind: output, shape index: {0}]
  %s17 = inlined_call_operand.hbm [shape: f32[16,128], index: 17, kind: output, shape index: {1}]
  %18 = xla_tuple %s16, %s17
  %s19 = sld [smem:[#allocation0]]
  $region105: #{coherence_forward.1} parent=0
    _
  %s21 = ssub.s32 1, %s19
  %s22 = scalar_select 0, %s21, %s19
  $region1: #{coherence_forward.1} parent=0
    #allocation2 [shape = 'u8[8192]{0}', space=vmem, size = 0x2000, scoped, tag = 'output window, operand 0']
    #allocation3 [shape = 's32[2]{0}', space=sflag, size = 0x8, scoped, tag = 'scoped memory for coherence_forward.1']
    #allocation4 [shape = 'u8[8192]{0}', space=vmem, size = 0x2000, scoped, tag = 'output window, operand 1']
    #allocation5 [shape = 's32[2]{0}', space=sflag, size = 0x8, scoped, tag = 'scoped memory for coherence_forward.1']
    %23 = vsyncpa [#allocation3], 0
    %s24 = scalar_lea.sflag [#allocation3], 1
    %25 = vsyncpa %s24, 0
    %26 = vsyncpa [#allocation5], 0
    %s27 = scalar_lea.sflag [#allocation5], 1
    %28 = vsyncpa %s27, 0
    loop: start=0, step=1, limit=4
    $region2: #{coherence_forward.1} parent=1 // loop_pre_header
      _
    $region3: #{coherence_forward.1} parent=1 // loop_header
      %s30 = sphi 0, %s34
      %p31 = scmp.ge.s32.totalorder %s30, 4
      %s40 = sphi 0, %s42
      %s43 = sphi 0, %s40
      %s44 = sphi 0, %s43
      %s60 = sphi 0, %s44
      %s64 = sphi 0, %s64
      %s66 = sphi 0, %s64
      %s67 = sphi 0, %s66
      %s81 = sphi 0, %s67
      %s85 = sphi 0, %s85
      %s87 = sphi 0, %s85
      %s88 = sphi 0, %s87
      %s102 = sphi 0, %s88
      %s106 = sphi 0, %s106
      %s108 = sphi 0, %s106
      %s109 = sphi 0, %s108
      %s123 = sphi 0, %s109
      %s127 = sphi 0, %s127
      %s129 = sphi 0, %s127
      %s130 = sphi 0, %s129
      %s144 = sphi 0, %s130
      %s148 = sphi 0, %s148
      %s150 = sphi 0, %s148
      %s151 = sphi 0, %s150
      %s165 = sphi 0, %s151
      %s169 = sphi 0, %s169
      %s171 = sphi 0, %s169
      %s172 = sphi 0, %s171
      %s186 = sphi 0, %s172
      %s190 = sphi 0, %s190
      %s192 = sphi 0, %s190
      %s193 = sphi 0, %s192
      %s207 = sphi 0, %s193
      %s211 = sphi 0, %s211
      %s213 = sphi 0, %s211
      %s214 = sphi 0, %s213
      %s228 = sphi 0, %s214
      %s232 = sphi 0, %s232
      %s234 = sphi 0, %s232
      %s235 = sphi 0, %s234
      %s249 = sphi 0, %s235
      %s253 = sphi 0, %s253
      %s255 = sphi 0, %s253
      %s256 = sphi 0, %s255
      %s270 = sphi 0, %s256
      %s274 = sphi 0, %s274
      %s276 = sphi 0, %s274
      %s277 = sphi 0, %s276
      %s291 = sphi 0, %s277
      %s295 = sphi 0, %s295
      %s297 = sphi 0, %s295
      %s298 = sphi 0, %s297
      %s312 = sphi 0, %s298
      %s316 = sphi 0, %s316
      %s318 = sphi 0, %s316
      %s319 = sphi 0, %s318
      %s333 = sphi 0, %s319
      %s337 = sphi 0, %s337
      %s339 = sphi 0, %s337
      %s340 = sphi 0, %s339
      %s354 = sphi 0, %s340
      %s358 = sphi 0, %s358
      %s360 = sphi 0, %s358
      %s361 = sphi 0, %s360
      %s375 = sphi 0, %s361
      %s381 = sphi 0, %s383
      %s384 = sphi 0, %s381
      %s385 = sphi 0, %s384
      %s401 = sphi 0, %s385
      %s407 = sphi 0, %s409
      %s410 = sphi 0, %s407
      %s411 = sphi 0, %s410
      %s427 = sphi 0, %s411
    $region4: #{coherence_forward.1} parent=1 // loop_header_branch
      %33 = sbr.rel (%p31) target = $region8
    $region5: #{coherence_forward.1} parent=1 // loop_body
      %s35 = ssub.s32 %s30, 1
      %s36 = ssub.s32 %s30, 2
      %s37 = sadd.s32 %s30, 1
      %s38 = ssub.s32 %s30, %s37
      %p39 = scmp.eq.s32.totalorder %s38, 0
      %s41 = sadd.s32 %s40, 1
      %s42 = scalar_select %p39, %s40, %s41
      %p45 = pneg %p39
      %p46 = scmp.eq.s32.totalorder %s30, 1
      %p47 = por %p45, %p46
      %p48 = scmp.ne.s32.totalorder %s40, %s43
      %p49 = scmp.eq.s32.totalorder %s30, 0
      %p50 = por %p48, %p49
      %p51 = scmp.ne.s32.totalorder %s40, %s43
      %p52 = scmp.eq.s32.totalorder %s35, 1
      %p53 = por %p51, %p52
      %p54 = scmp.ne.s32.totalorder %s43, %s44
      %p55 = scmp.eq.s32.totalorder %s35, 0
      %p56 = por %p54, %p55
      %p57 = scmp.ne.s32.totalorder %s43, %s44
      %p58 = scmp.eq.s32.totalorder %s36, 1
      %p59 = por %p57, %p58
      %p61 = scmp.ne.s32.totalorder %s44, %s60
      %p62 = scmp.eq.s32.totalorder %s36, 0
      %p63 = por %p61, %p62
      %s65 = sadd.s32 %s64, 1
      %p68 = scmp.eq.s32.totalorder %s30, 1
      %p69 = scmp.ne.s32.totalorder %s64, %s66
      %p70 = scmp.eq.s32.totalorder %s30, 0
      %p71 = por %p69, %p70
      %p72 = scmp.ne.s32.totalorder %s64, %s66
      %p73 = scmp.eq.s32.totalorder %s35, 1
      %p74 = por %p72, %p73
      %p75 = scmp.ne.s32.totalorder %s66, %s67
      %p76 = scmp.eq.s32.totalorder %s35, 0
      %p77 = por %p75, %p76
      %p78 = scmp.ne.s32.totalorder %s66, %s67
      %p79 = scmp.eq.s32.totalorder %s36, 1
      %p80 = por %p78, %p79
      %p82 = scmp.ne.s32.totalorder %s67, %s81
      %p83 = scmp.eq.s32.totalorder %s36, 0
      %p84 = por %p82, %p83
      %s86 = sadd.s32 %s85, 1
      %p89 = scmp.eq.s32.totalorder %s30, 1
      %p90 = scmp.ne.s32.totalorder %s85, %s87
      %p91 = scmp.eq.s32.totalorder %s30, 0
      %p92 = por %p90, %p91
      %p93 = scmp.ne.s32.totalorder %s85, %s87
      %p94 = scmp.eq.s32.totalorder %s35, 1
      %p95 = por %p93, %p94
      %p96 = scmp.ne.s32.totalorder %s87, %s88
      %p97 = scmp.eq.s32.totalorder %s35, 0
      %p98 = por %p96, %p97
      %p99 = scmp.ne.s32.totalorder %s87, %s88
      %p100 = scmp.eq.s32.totalorder %s36, 1
      %p101 = por %p99, %p100
      %p103 = scmp.ne.s32.totalorder %s88, %s102
      %p104 = scmp.eq.s32.totalorder %s36, 0
      %p105 = por %p103, %p104
      %s107 = sadd.s32 %s106, 1
      %p110 = scmp.eq.s32.totalorder %s30, 1
      %p111 = scmp.ne.s32.totalorder %s106, %s108
      %p112 = scmp.eq.s32.totalorder %s30, 0
      %p113 = por %p111, %p112
      %p114 = scmp.ne.s32.totalorder %s106, %s108
      %p115 = scmp.eq.s32.totalorder %s35, 1
      %p116 = por %p114, %p115
      %p117 = scmp.ne.s32.totalorder %s108, %s109
      %p118 = scmp.eq.s32.totalorder %s35, 0
      %p119 = por %p117, %p118
      %p120 = scmp.ne.s32.totalorder %s108, %s109
      %p121 = scmp.eq.s32.totalorder %s36, 1
      %p122 = por %p120, %p121
      %p124 = scmp.ne.s32.totalorder %s109, %s123
      %p125 = scmp.eq.s32.totalorder %s36, 0
      %p126 = por %p124, %p125
      %s128 = sadd.s32 %s127, 1
      %p131 = scmp.eq.s32.totalorder %s30, 1
      %p132 = scmp.ne.s32.totalorder %s127, %s129
      %p133 = scmp.eq.s32.totalorder %s30, 0
      %p134 = por %p132, %p133
      %p135 = scmp.ne.s32.totalorder %s127, %s129
      %p136 = scmp.eq.s32.totalorder %s35, 1
      %p137 = por %p135, %p136
      %p138 = scmp.ne.s32.totalorder %s129, %s130
      %p139 = scmp.eq.s32.totalorder %s35, 0
      %p140 = por %p138, %p139
      %p141 = scmp.ne.s32.totalorder %s129, %s130
      %p142 = scmp.eq.s32.totalorder %s36, 1
      %p143 = por %p141, %p142
      %p145 = scmp.ne.s32.totalorder %s130, %s144
      %p146 = scmp.eq.s32.totalorder %s36, 0
      %p147 = por %p145, %p146
      %s149 = sadd.s32 %s148, 1
      %p152 = scmp.eq.s32.totalorder %s30, 1
      %p153 = scmp.ne.s32.totalorder %s148, %s150
      %p154 = scmp.eq.s32.totalorder %s30, 0
      %p155 = por %p153, %p154
      %p156 = scmp.ne.s32.totalorder %s148, %s150
      %p157 = scmp.eq.s32.totalorder %s35, 1
      %p158 = por %p156, %p157
      %p159 = scmp.ne.s32.totalorder %s150, %s151
      %p160 = scmp.eq.s32.totalorder %s35, 0
      %p161 = por %p159, %p160
      %p162 = scmp.ne.s32.totalorder %s150, %s151
      %p163 = scmp.eq.s32.totalorder %s36, 1
      %p164 = por %p162, %p163
      %p166 = scmp.ne.s32.totalorder %s151, %s165
      %p167 = scmp.eq.s32.totalorder %s36, 0
      %p168 = por %p166, %p167
      %s170 = sadd.s32 %s169, 1
      %p173 = scmp.eq.s32.totalorder %s30, 1
      %p174 = scmp.ne.s32.totalorder %s169, %s171
      %p175 = scmp.eq.s32.totalorder %s30, 0
      %p176 = por %p174, %p175
      %p177 = scmp.ne.s32.totalorder %s169, %s171
      %p178 = scmp.eq.s32.totalorder %s35, 1
      %p179 = por %p177, %p178
      %p180 = scmp.ne.s32.totalorder %s171, %s172
      %p181 = scmp.eq.s32.totalorder %s35, 0
      %p182 = por %p180, %p181
      %p183 = scmp.ne.s32.totalorder %s171, %s172
      %p184 = scmp.eq.s32.totalorder %s36, 1
      %p185 = por %p183, %p184
      %p187 = scmp.ne.s32.totalorder %s172, %s186
      %p188 = scmp.eq.s32.totalorder %s36, 0
      %p189 = por %p187, %p188
      %s191 = sadd.s32 %s190, 1
      %p194 = scmp.eq.s32.totalorder %s30, 1
      %p195 = scmp.ne.s32.totalorder %s190, %s192
      %p196 = scmp.eq.s32.totalorder %s30, 0
      %p197 = por %p195, %p196
      %p198 = scmp.ne.s32.totalorder %s190, %s192
      %p199 = scmp.eq.s32.totalorder %s35, 1
      %p200 = por %p198, %p199
      %p201 = scmp.ne.s32.totalorder %s192, %s193
      %p202 = scmp.eq.s32.totalorder %s35, 0
      %p203 = por %p201, %p202
      %p204 = scmp.ne.s32.totalorder %s192, %s193
      %p205 = scmp.eq.s32.totalorder %s36, 1
      %p206 = por %p204, %p205
      %p208 = scmp.ne.s32.totalorder %s193, %s207
      %p209 = scmp.eq.s32.totalorder %s36, 0
      %p210 = por %p208, %p209
      %s212 = sadd.s32 %s211, 1
      %p215 = scmp.eq.s32.totalorder %s30, 1
      %p216 = scmp.ne.s32.totalorder %s211, %s213
      %p217 = scmp.eq.s32.totalorder %s30, 0
      %p218 = por %p216, %p217
      %p219 = scmp.ne.s32.totalorder %s211, %s213
      %p220 = scmp.eq.s32.totalorder %s35, 1
      %p221 = por %p219, %p220
      %p222 = scmp.ne.s32.totalorder %s213, %s214
      %p223 = scmp.eq.s32.totalorder %s35, 0
      %p224 = por %p222, %p223
      %p225 = scmp.ne.s32.totalorder %s213, %s214
      %p226 = scmp.eq.s32.totalorder %s36, 1
      %p227 = por %p225, %p226
      %p229 = scmp.ne.s32.totalorder %s214, %s228
      %p230 = scmp.eq.s32.totalorder %s36, 0
      %p231 = por %p229, %p230
      %s233 = sadd.s32 %s232, 1
      %p236 = scmp.eq.s32.totalorder %s30, 1
      %p237 = scmp.ne.s32.totalorder %s232, %s234
      %p238 = scmp.eq.s32.totalorder %s30, 0
      %p239 = por %p237, %p238
      %p240 = scmp.ne.s32.totalorder %s232, %s234
      %p241 = scmp.eq.s32.totalorder %s35, 1
      %p242 = por %p240, %p241
      %p243 = scmp.ne.s32.totalorder %s234, %s235
      %p244 = scmp.eq.s32.totalorder %s35, 0
      %p245 = por %p243, %p244
      %p246 = scmp.ne.s32.totalorder %s234, %s235
      %p247 = scmp.eq.s32.totalorder %s36, 1
      %p248 = por %p246, %p247
      %p250 = scmp.ne.s32.totalorder %s235, %s249
      %p251 = scmp.eq.s32.totalorder %s36, 0
      %p252 = por %p250, %p251
      %s254 = sadd.s32 %s253, 1
      %p257 = scmp.eq.s32.totalorder %s30, 1
      %p258 = scmp.ne.s32.totalorder %s253, %s255
      %p259 = scmp.eq.s32.totalorder %s30, 0
      %p260 = por %p258, %p259
      %p261 = scmp.ne.s32.totalorder %s253, %s255
      %p262 = scmp.eq.s32.totalorder %s35, 1
      %p263 = por %p261, %p262
      %p264 = scmp.ne.s32.totalorder %s255, %s256
      %p265 = scmp.eq.s32.totalorder %s35, 0
      %p266 = por %p264, %p265
      %p267 = scmp.ne.s32.totalorder %s255, %s256
      %p268 = scmp.eq.s32.totalorder %s36, 1
      %p269 = por %p267, %p268
      %p271 = scmp.ne.s32.totalorder %s256, %s270
      %p272 = scmp.eq.s32.totalorder %s36, 0
      %p273 = por %p271, %p272
      %s275 = sadd.s32 %s274, 1
      %p278 = scmp.eq.s32.totalorder %s30, 1
      %p279 = scmp.ne.s32.totalorder %s274, %s276
      %p280 = scmp.eq.s32.totalorder %s30, 0
      %p281 = por %p279, %p280
      %p282 = scmp.ne.s32.totalorder %s274, %s276
      %p283 = scmp.eq.s32.totalorder %s35, 1
      %p284 = por %p282, %p283
      %p285 = scmp.ne.s32.totalorder %s276, %s277
      %p286 = scmp.eq.s32.totalorder %s35, 0
      %p287 = por %p285, %p286
      %p288 = scmp.ne.s32.totalorder %s276, %s277
      %p289 = scmp.eq.s32.totalorder %s36, 1
      %p290 = por %p288, %p289
      %p292 = scmp.ne.s32.totalorder %s277, %s291
      %p293 = scmp.eq.s32.totalorder %s36, 0
      %p294 = por %p292, %p293
      %s296 = sadd.s32 %s295, 1
      %p299 = scmp.eq.s32.totalorder %s30, 1
      %p300 = scmp.ne.s32.totalorder %s295, %s297
      %p301 = scmp.eq.s32.totalorder %s30, 0
      %p302 = por %p300, %p301
      %p303 = scmp.ne.s32.totalorder %s295, %s297
      %p304 = scmp.eq.s32.totalorder %s35, 1
      %p305 = por %p303, %p304
      %p306 = scmp.ne.s32.totalorder %s297, %s298
      %p307 = scmp.eq.s32.totalorder %s35, 0
      %p308 = por %p306, %p307
      %p309 = scmp.ne.s32.totalorder %s297, %s298
      %p310 = scmp.eq.s32.totalorder %s36, 1
      %p311 = por %p309, %p310
      %p313 = scmp.ne.s32.totalorder %s298, %s312
      %p314 = scmp.eq.s32.totalorder %s36, 0
      %p315 = por %p313, %p314
      %s317 = sadd.s32 %s316, 1
      %p320 = scmp.eq.s32.totalorder %s30, 1
      %p321 = scmp.ne.s32.totalorder %s316, %s318
      %p322 = scmp.eq.s32.totalorder %s30, 0
      %p323 = por %p321, %p322
      %p324 = scmp.ne.s32.totalorder %s316, %s318
      %p325 = scmp.eq.s32.totalorder %s35, 1
      %p326 = por %p324, %p325
      %p327 = scmp.ne.s32.totalorder %s318, %s319
      %p328 = scmp.eq.s32.totalorder %s35, 0
      %p329 = por %p327, %p328
      %p330 = scmp.ne.s32.totalorder %s318, %s319
      %p331 = scmp.eq.s32.totalorder %s36, 1
      %p332 = por %p330, %p331
      %p334 = scmp.ne.s32.totalorder %s319, %s333
      %p335 = scmp.eq.s32.totalorder %s36, 0
      %p336 = por %p334, %p335
      %s338 = sadd.s32 %s337, 1
      %p341 = scmp.eq.s32.totalorder %s30, 1
      %p342 = scmp.ne.s32.totalorder %s337, %s339
      %p343 = scmp.eq.s32.totalorder %s30, 0
      %p344 = por %p342, %p343
      %p345 = scmp.ne.s32.totalorder %s337, %s339
      %p346 = scmp.eq.s32.totalorder %s35, 1
      %p347 = por %p345, %p346
      %p348 = scmp.ne.s32.totalorder %s339, %s340
      %p349 = scmp.eq.s32.totalorder %s35, 0
      %p350 = por %p348, %p349
      %p351 = scmp.ne.s32.totalorder %s339, %s340
      %p352 = scmp.eq.s32.totalorder %s36, 1
      %p353 = por %p351, %p352
      %p355 = scmp.ne.s32.totalorder %s340, %s354
      %p356 = scmp.eq.s32.totalorder %s36, 0
      %p357 = por %p355, %p356
      %s359 = sadd.s32 %s358, 1
      %p362 = scmp.eq.s32.totalorder %s30, 1
      %p363 = scmp.ne.s32.totalorder %s358, %s360
      %p364 = scmp.eq.s32.totalorder %s30, 0
      %p365 = por %p363, %p364
      %p366 = scmp.ne.s32.totalorder %s358, %s360
      %p367 = scmp.eq.s32.totalorder %s35, 1
      %p368 = por %p366, %p367
      %p369 = scmp.ne.s32.totalorder %s360, %s361
      %p370 = scmp.eq.s32.totalorder %s35, 0
      %p371 = por %p369, %p370
      %p372 = scmp.ne.s32.totalorder %s360, %s361
      %p373 = scmp.eq.s32.totalorder %s36, 1
      %p374 = por %p372, %p373
      %p376 = scmp.ne.s32.totalorder %s361, %s375
      %p377 = scmp.eq.s32.totalorder %s36, 0
      %p378 = por %p376, %p377
      %s379 = ssub.s32 %s30, %s37
      %p380 = scmp.eq.s32.totalorder %s379, 0
      %s382 = sadd.s32 %s381, 1
      %s383 = scalar_select %p380, %s381, %s382
      %p386 = pneg %p380
      %p387 = scmp.eq.s32.totalorder %s30, 1
      %p388 = por %p386, %p387
      %p389 = scmp.ne.s32.totalorder %s381, %s384
      %p390 = scmp.eq.s32.totalorder %s30, 0
      %p391 = por %p389, %p390
      %p392 = scmp.ne.s32.totalorder %s381, %s384
      %p393 = scmp.eq.s32.totalorder %s35, 1
      %p394 = por %p392, %p393
      %p395 = scmp.ne.s32.totalorder %s384, %s385
      %p396 = scmp.eq.s32.totalorder %s35, 0
      %p397 = por %p395, %p396
      %p398 = scmp.ne.s32.totalorder %s384, %s385
      %p399 = scmp.eq.s32.totalorder %s36, 1
      %p400 = por %p398, %p399
      %p402 = scmp.ne.s32.totalorder %s385, %s401
      %p403 = scmp.eq.s32.totalorder %s36, 0
      %p404 = por %p402, %p403
      %s405 = ssub.s32 %s30, %s37
      %p406 = scmp.eq.s32.totalorder %s405, 0
      %s408 = sadd.s32 %s407, 1
      %s409 = scalar_select %p406, %s407, %s408
      %p412 = pneg %p406
      %p413 = scmp.eq.s32.totalorder %s30, 1
      %p414 = por %p412, %p413
      %p415 = scmp.ne.s32.totalorder %s407, %s410
      %p416 = scmp.eq.s32.totalorder %s30, 0
      %p417 = por %p415, %p416
      %p418 = scmp.ne.s32.totalorder %s407, %s410
      %p419 = scmp.eq.s32.totalorder %s35, 1
      %p420 = por %p418, %p419
      %p421 = scmp.ne.s32.totalorder %s410, %s411
      %p422 = scmp.eq.s32.totalorder %s35, 0
      %p423 = por %p421, %p422
      %p424 = scmp.ne.s32.totalorder %s410, %s411
      %p425 = scmp.eq.s32.totalorder %s36, 1
      %p426 = por %p424, %p425
      %p428 = scmp.ne.s32.totalorder %s411, %s427
      %p429 = scmp.eq.s32.totalorder %s36, 0
      %p430 = por %p428, %p429
      %p431 = scmp.le.s32.totalorder 1, %s30
      %p432 = scmp.lt.s32.totalorder %s30, 3
      %p433 = pnand %p431, %p432
      %p434 = pneg %p433
      // Predicated region
      $region9: #{coherence_forward.1} parent=5 // pred_check
        _
      $region10: #{coherence_forward.1} parent=5 // pred_check_branch
        %436 = sbr.rel (%p433) target = $region12
      $region11: #{coherence_forward.1} parent=5 // pred_region
        %s437 = ssub.s32 %s30, 1
        // Predicated region
        $region13: #{coherence_forward.1} parent=11 // pred_check
          %p438 = pneg %p77
        $region14: #{coherence_forward.1} parent=11 // pred_check_branch
          %440 = sbr.rel (%p438) target = $region16
        $region15: #{coherence_forward.1} parent=11 // pred_region
          _
        $region16: #{coherence_forward.1} parent=11 // pred_fallthru
          _
        // Predicated region
        $region17: #{coherence_forward.1} parent=11 // pred_check
          %p441 = pneg %p98
        $region18: #{coherence_forward.1} parent=11 // pred_check_branch
          %443 = sbr.rel (%p441) target = $region20
        $region19: #{coherence_forward.1} parent=11 // pred_region
          _
        $region20: #{coherence_forward.1} parent=11 // pred_fallthru
          _
        // Predicated region
        $region21: #{coherence_forward.1} parent=11 // pred_check
          %p444 = pneg %p119
        $region22: #{coherence_forward.1} parent=11 // pred_check_branch
          %446 = sbr.rel (%p444) target = $region24
        $region23: #{coherence_forward.1} parent=11 // pred_region
          _
        $region24: #{coherence_forward.1} parent=11 // pred_fallthru
          _
        // Predicated region
        $region25: #{coherence_forward.1} parent=11 // pred_check
          %p447 = pneg %p140
        $region26: #{coherence_forward.1} parent=11 // pred_check_branch
          %449 = sbr.rel (%p447) target = $region28
        $region27: #{coherence_forward.1} parent=11 // pred_region
          _
        $region28: #{coherence_forward.1} parent=11 // pred_fallthru
          _
        // Predicated region
        $region29: #{coherence_forward.1} parent=11 // pred_check
          %p450 = pneg %p161
        $region30: #{coherence_forward.1} parent=11 // pred_check_branch
          %452 = sbr.rel (%p450) target = $region32
        $region31: #{coherence_forward.1} parent=11 // pred_region
          _
        $region32: #{coherence_forward.1} parent=11 // pred_fallthru
          _
        // Predicated region
        $region33: #{coherence_forward.1} parent=11 // pred_check
          %p453 = pneg %p182
        $region34: #{coherence_forward.1} parent=11 // pred_check_branch
          %455 = sbr.rel (%p453) target = $region36
        $region35: #{coherence_forward.1} parent=11 // pred_region
          _
        $region36: #{coherence_forward.1} parent=11 // pred_fallthru
          _
        // Predicated region
        $region37: #{coherence_forward.1} parent=11 // pred_check
          %p456 = pneg %p203
        $region38: #{coherence_forward.1} parent=11 // pred_check_branch
          %458 = sbr.rel (%p456) target = $region40
        $region39: #{coherence_forward.1} parent=11 // pred_region
          _
        $region40: #{coherence_forward.1} parent=11 // pred_fallthru
          _
        // Predicated region
        $region41: #{coherence_forward.1} parent=11 // pred_check
          %p459 = pneg %p224
        $region42: #{coherence_forward.1} parent=11 // pred_check_branch
          %461 = sbr.rel (%p459) target = $region44
        $region43: #{coherence_forward.1} parent=11 // pred_region
          _
        $region44: #{coherence_forward.1} parent=11 // pred_fallthru
          _
        // Predicated region
        $region45: #{coherence_forward.1} parent=11 // pred_check
          %p462 = pneg %p245
        $region46: #{coherence_forward.1} parent=11 // pred_check_branch
          %464 = sbr.rel (%p462) target = $region48
        $region47: #{coherence_forward.1} parent=11 // pred_region
          _
        $region48: #{coherence_forward.1} parent=11 // pred_fallthru
          _
        // Predicated region
        $region49: #{coherence_forward.1} parent=11 // pred_check
          %p465 = pneg %p266
        $region50: #{coherence_forward.1} parent=11 // pred_check_branch
          %467 = sbr.rel (%p465) target = $region52
        $region51: #{coherence_forward.1} parent=11 // pred_region
          _
        $region52: #{coherence_forward.1} parent=11 // pred_fallthru
          _
        // Predicated region
        $region53: #{coherence_forward.1} parent=11 // pred_check
          %p468 = pneg %p287
        $region54: #{coherence_forward.1} parent=11 // pred_check_branch
          %470 = sbr.rel (%p468) target = $region56
        $region55: #{coherence_forward.1} parent=11 // pred_region
          _
        $region56: #{coherence_forward.1} parent=11 // pred_fallthru
          _
        // Predicated region
        $region57: #{coherence_forward.1} parent=11 // pred_check
          %p471 = pneg %p308
        $region58: #{coherence_forward.1} parent=11 // pred_check_branch
          %473 = sbr.rel (%p471) target = $region60
        $region59: #{coherence_forward.1} parent=11 // pred_region
          _
        $region60: #{coherence_forward.1} parent=11 // pred_fallthru
          _
        // Predicated region
        $region61: #{coherence_forward.1} parent=11 // pred_check
          %p474 = pneg %p329
        $region62: #{coherence_forward.1} parent=11 // pred_check_branch
          %476 = sbr.rel (%p474) target = $region64
        $region63: #{coherence_forward.1} parent=11 // pred_region
          _
        $region64: #{coherence_forward.1} parent=11 // pred_fallthru
          _
        // Predicated region
        $region65: #{coherence_forward.1} parent=11 // pred_check
          %p477 = pneg %p350
        $region66: #{coherence_forward.1} parent=11 // pred_check_branch
          %479 = sbr.rel (%p477) target = $region68
        $region67: #{coherence_forward.1} parent=11 // pred_region
          _
        $region68: #{coherence_forward.1} parent=11 // pred_fallthru
          _
        // Predicated region
        $region69: #{coherence_forward.1} parent=11 // pred_check
          %p480 = pneg %p371
        $region70: #{coherence_forward.1} parent=11 // pred_check_branch
          %482 = sbr.rel (%p480) target = $region72
        $region71: #{coherence_forward.1} parent=11 // pred_region
          _
        $region72: #{coherence_forward.1} parent=11 // pred_fallthru
          _
      $region12: #{coherence_forward.1} parent=5 // pred_fallthru
        _
      %p483 = scmp.lt.s32.totalorder %s30, 2
      // Predicated region
      $region73: #{coherence_forward.1} parent=5 // pred_check
        %p484 = pneg %p483
      $region74: #{coherence_forward.1} parent=5 // pred_check_branch
        %486 = sbr.rel (%p484) target = $region76
      $region75: #{coherence_forward.1} parent=5 // pred_region
        // Predicated region
        $region77: #{coherence_forward.1} parent=75 // pred_check
          %p487 = pneg %p50
        $region78: #{coherence_forward.1} parent=75 // pred_check_branch
          %489 = sbr.rel (%p487) target = $region80
        $region79: #{coherence_forward.1} parent=75 // pred_region
          %p490 = scmp.lt.s32.totalorder %s30, 1
          %s491 = scalar_select %p490, %s30, 1
          %s492 = smul.addr %s491, 8
          %s493 = scalar_lea.vmem %s0, %s492
        $region80: #{coherence_forward.1} parent=75 // pred_fallthru
          _
      $region76: #{coherence_forward.1} parent=5 // pred_fallthru
        _
      %p494 = scmp.le.s32.totalorder 1, %s30
      %p495 = scmp.lt.s32.totalorder %s30, 3
      %p496 = pnand %p494, %p495
      %p497 = pneg %p496
      // Predicated region
      $region81: #{coherence_forward.1} parent=5 // pred_check
        _
      $region82: #{coherence_forward.1} parent=5 // pred_check_branch
        %499 = sbr.rel (%p496) target = $region84
      $region83: #{coherence_forward.1} parent=5 // pred_region
        %s500 = ssub.s32 %s30, 1
        %p501 = scmp.lt.s32.totalorder %s35, 1
        %s502 = scalar_select %p501, %s35, 1
        %s503 = smul.addr %s502, 8
        %s504 = scalar_lea.vmem %s0, %s503
        %p505 = pneg %p56
        %p506 = pneg %p53
        %p507 = pneg %p77
        %p508 = pneg %p74
        %p509 = pneg %p98
        %p510 = pneg %p95
        %p511 = pneg %p119
        %p512 = pneg %p116
        %p513 = pneg %p140
        %p514 = pneg %p137
        %p515 = pneg %p161
        %p516 = pneg %p158
        %p517 = pneg %p182
        %p518 = pneg %p179
        %p519 = pneg %p203
        %p520 = pneg %p200
        %p521 = pneg %p224
        %p522 = pneg %p221
        %p523 = pneg %p245
        %p524 = pneg %p242
        %p525 = pneg %p266
        %p526 = pneg %p263
        %p527 = pneg %p287
        %p528 = pneg %p284
        %p529 = pneg %p308
        %p530 = pneg %p305
        %p531 = pneg %p329
        %p532 = pneg %p326
        %p533 = pneg %p350
        %p534 = pneg %p347
        %p535 = pneg %p371
        %p536 = pneg %p368
        %p537 = pneg %p397
        %p538 = pneg %p394
        %s539 = sand.u32 %s384, 1
        %s540 = scalar_lea.sflag [#allocation3], %s539
        %s541 = sand.u32 %s384, 1
        %s542 = smul.addr %s541, 8
        %s543 = scalar_lea.vmem [#allocation2], %s542
        %p544 = pneg %p423
        %p545 = pneg %p420
        %s546 = sand.u32 %s410, 1
        %s547 = scalar_lea.sflag [#allocation5], %s546
        %s548 = sand.u32 %s410, 1
        %s549 = smul.addr %s548, 8
        %s550 = scalar_lea.vmem [#allocation4], %s549
        %p551 = scmp.lt.s32.totalorder %s35, 1
        %s552 = scalar_select %p551, %s35, 1
        %s553 = smul.addr %s552, 8
        %s554 = scalar_lea.vmem %s0, %s553
        %v555 = vld [vmem:[%s554] sm:$0xff]
        %v556 = vlaneseq
        %v557 = vshrl.u32 %v556, 7
        %v558 = vlaneseq
        %v559 = vand.u32 %v558, 127
        %vm560 = vcmp.le.s32.totalorder %v559, %v557
        %v561 = vld [vmem:[%s1] sm:$0x1]
        %v562 = vld [vmem:[%s2] sm:$0x1]
        %vm563 = vcmask 261120
        %v564 = vsel %vm563, %v555, 0.0
        %565 = vadd.xlane.f32.xlu0 %v564
        %v566 = vpop.xlane.xlu0 %565
        %v567 = vrcp.pop 32.0
        %v568 = vmul.f32 32.0, %v567
        %v569 = vsub.f32 1.0, %v568
        %v570 = vmul.f32 %v567, %v569
        %v571 = vadd.f32 %v567, %v570
        %vm572 = vweird.f32 %v567
        %v573 = vsel %vm572, %v567, %v571
        %v574 = vmul.f32 %v566, %v573
        %v575 = vsub.f32 %v555, %v574
        %v576 = vmul.f32 %v575, %v575
        %v577 = vsel %vm563, %v576, 0.0
        %578 = vadd.xlane.f32.xlu0 %v577
        %v579 = vpop.xlane.xlu0 %578
        %v580 = vmul.f32 %v579, %v573
        %v581 = vadd.f32 %v580, 1e-05
        %v582 = vrsqrt.pop %v581
        %v583 = vmul.f32 %v582, %v581
        %v584 = vmul.f32 %v583, %v582
        %v585 = vmul.f32 0.5, %v584
        %v586 = vsub.f32 1.5, %v585
        %v587 = vmul.f32 %v582, %v586
        %vm588 = vweird.f32 %v581
        %vm589 = vweird.f32 %v582
        %vm590 = vmor %vm588, %vm589
        %v591 = vsel %vm590, %v582, %v587
        %v592 = vmul.f32 %v575, %v591
        %v594 = vperm.slane %v561, 0
        %v596 = vmul.f32 %v592, %v594
        %v598 = vperm.slane %v562, 0
        %v600 = vadd.f32 %v596, %v598
        %v601 = vld [vmem:[%s3] sm:$0xff]
        %v602 = vld [vmem:[%s3 + $0x8] sm:$0xff]
        %v603 = vld [vmem:[%s3 + $0x10] sm:$0xff]
        %v604 = vld [vmem:[%s3 + $0x18] sm:$0xff]
        %v605 = vld [vmem:[%s4] sm:$0x1]
        %v607 = vperm.slane %v605, 0
        %v610 = vsel %vm563, %v600, 0
        %612 = vmatpush.msra.mxu0 0.0
        %613 = vmatpush.msra.mxu0 0.0
        %614 = vmatpush.msra.mxu0 0.0
        %615 = vmatpush.msra.mxu0 0.0
        %616 = vmatpush.msra.mxu0 0.0
        %617 = vmatpush.msra.mxu0 0.0
        %618 = vmatpush.msra.mxu0 0.0
        %619 = vmatpush.msra.mxu0 0.0
        %620 = vmatpush.msra.mxu0 0.0
        %621 = vmatpush.msra.mxu0 0.0
        %622 = vmatpush.msra.mxu0 0.0
        %623 = vmatpush.msra.mxu0 0.0
        %624 = vmatpush.msra.mxu0 %v604
        %625 = vmatpush.msra.mxu0 %v603
        %626 = vmatpush.msra.mxu0 %v602
        %627 = vmatpush.msra.mxu0 %v601
        %628 = vmatmul.f32.gmra.mxu0 %v610
        %v629 = vpop.f32.mrf.mxu0
        %v630 = vadd.f32 %v607, %v629
        %631 = vdwg.mxu0
        %v632 = vmul.f32 %v630, 0.25
        %634 = vrot.lane.b32.xlu0 %v630, 96
        %v635 = vpop.permute.xlu0 %634
        %vm636 = vcmask 130048
        %v638 = vsel %vm636, %v632, 0
        %v640 = vsel %vm636, %v635, 0
        %642 = vmatpush.xpose.msra.mxu0 0.0
        %643 = vmatpush.xpose.msra.mxu0 0.0
        %644 = vmatpush.xpose.msra.mxu0 0.0
        %645 = vmatpush.xpose.msra.mxu0 0.0
        %646 = vmatpush.xpose.msra.mxu0 0.0
        %647 = vmatpush.xpose.msra.mxu0 0.0
        %648 = vmatpush.xpose.msra.mxu0 0.0
        %649 = vmatpush.xpose.msra.mxu0 0.0
        %650 = vmatpush.xpose.msra.mxu0 0.0
        %651 = vmatpush.xpose.msra.mxu0 0.0
        %652 = vmatpush.xpose.msra.mxu0 0.0
        %653 = vmatpush.xpose.msra.mxu0 0.0
        %654 = vmatpush.xpose.msra.mxu0 0.0
        %655 = vmatpush.xpose.msra.mxu0 0.0
        %656 = vmatpush.xpose.msra.mxu0 0.0
        %657 = vmatpush.xpose.msra.mxu0 %v640
        %658 = vmatmul.f32.gmra.mxu0 %v638
        %v659 = vpop.f32.mrf.mxu0
        %v660 = vadd.f32 0.0, %v659
        %661 = vdwg.mxu0
        %v662 = vsel %vm560, %v660, -1e+30
        %vm663 = vcmask 64512
        %v664 = vsel %vm663, %v662, -inf
        %665 = vmax.xlane.f32.xlu0 %v664
        %v666 = vpop.xlane.xlu0 %665
        %v667 = vsub.f32 %v662, %v666
        %v668 = vmul.f32 %v667, 1.442695
        %v669 = vpow.pop %v668
        %v670 = vsel %vm663, %v669, 0.0
        %671 = vadd.xlane.f32.xlu0 %v670
        %v672 = vpop.xlane.xlu0 %671
        %v673 = vrcp.pop %v672
        %v674 = vmul.f32 %v669, %v673
        %675 = vrot.lane.b32.xlu0 %v630, 64
        %v676 = vpop.permute.xlu0 %675
        %v679 = vsel %vm663, %v674, 0
        %681 = vmatpush.msra.mxu0 0.0
        %682 = vmatpush.msra.mxu0 0.0
        %683 = vmatpush.msra.mxu0 0.0
        %684 = vmatpush.msra.mxu0 0.0
        %685 = vmatpush.msra.mxu0 0.0
        %686 = vmatpush.msra.mxu0 0.0
        %687 = vmatpush.msra.mxu0 0.0
        %688 = vmatpush.msra.mxu0 0.0
        %689 = vmatpush.msra.mxu0 0.0
        %690 = vmatpush.msra.mxu0 0.0
        %691 = vmatpush.msra.mxu0 0.0
        %692 = vmatpush.msra.mxu0 0.0
        %693 = vmatpush.msra.mxu0 0.0
        %694 = vmatpush.msra.mxu0 0.0
        %695 = vmatpush.msra.mxu0 0.0
        %696 = vmatpush.msra.mxu0 %v676
        %697 = vmatmul.f32.gmra.mxu0 %v679
        %v698 = vpop.f32.mrf.mxu0
        %v699 = vadd.f32 0.0, %v698
        %700 = vdwg.mxu0
        %701 = vrot.lane.b32.xlu0 %v632, 112
        %v702 = vpop.permute.xlu0 %701
        %703 = vrot.lane.b32.xlu0 %v630, 80
        %v704 = vpop.permute.xlu0 %703
        %v705 = vsel %vm636, %v702, 0
        %v707 = vsel %vm636, %v704, 0
        %709 = vmatpush.xpose.msra.mxu0 0.0
        %710 = vmatpush.xpose.msra.mxu0 0.0
        %711 = vmatpush.xpose.msra.mxu0 0.0
        %712 = vmatpush.xpose.msra.mxu0 0.0
        %713 = vmatpush.xpose.msra.mxu0 0.0
        %714 = vmatpush.xpose.msra.mxu0 0.0
        %715 = vmatpush.xpose.msra.mxu0 0.0
        %716 = vmatpush.xpose.msra.mxu0 0.0
        %717 = vmatpush.xpose.msra.mxu0 0.0
        %718 = vmatpush.xpose.msra.mxu0 0.0
        %719 = vmatpush.xpose.msra.mxu0 0.0
        %720 = vmatpush.xpose.msra.mxu0 0.0
        %721 = vmatpush.xpose.msra.mxu0 0.0
        %722 = vmatpush.xpose.msra.mxu0 0.0
        %723 = vmatpush.xpose.msra.mxu0 0.0
        %724 = vmatpush.xpose.msra.mxu0 %v707
        %725 = vmatmul.f32.gmra.mxu0 %v705
        %v726 = vpop.f32.mrf.mxu0
        %v727 = vadd.f32 0.0, %v726
        %728 = vdwg.mxu0
        %v729 = vsel %vm560, %v727, -1e+30
        %v730 = vsel %vm663, %v729, -inf
        %731 = vmax.xlane.f32.xlu0 %v730
        %v732 = vpop.xlane.xlu0 %731
        %v733 = vsub.f32 %v729, %v732
        %v734 = vmul.f32 %v733, 1.442695
        %v735 = vpow.pop %v734
        %v736 = vsel %vm663, %v735, 0.0
        %737 = vadd.xlane.f32.xlu0 %v736
        %v738 = vpop.xlane.xlu0 %737
        %v739 = vrcp.pop %v738
        %v740 = vmul.f32 %v735, %v739
        %741 = vrot.lane.b32.xlu0 %v630, 48
        %v742 = vpop.permute.xlu0 %741
        %v745 = vsel %vm663, %v740, 0
        %747 = vmatpush.msra.mxu0 0.0
        %748 = vmatpush.msra.mxu0 0.0
        %749 = vmatpush.msra.mxu0 0.0
        %750 = vmatpush.msra.mxu0 0.0
        %751 = vmatpush.msra.mxu0 0.0
        %752 = vmatpush.msra.mxu0 0.0
        %753 = vmatpush.msra.mxu0 0.0
        %754 = vmatpush.msra.mxu0 0.0
        %755 = vmatpush.msra.mxu0 0.0
        %756 = vmatpush.msra.mxu0 0.0
        %757 = vmatpush.msra.mxu0 0.0
        %758 = vmatpush.msra.mxu0 0.0
        %759 = vmatpush.msra.mxu0 0.0
        %760 = vmatpush.msra.mxu0 0.0
        %761 = vmatpush.msra.mxu0 0.0
        %762 = vmatpush.msra.mxu0 %v742
        %763 = vmatmul.f32.gmra.mxu0 %v745
        %v764 = vpop.f32.mrf.mxu0
        %v765 = vadd.f32 0.0, %v764
        %766 = vdwg.mxu0
        %768 = vrot.lane.b32.xlu0 %v765, 16
        %v769 = vpop.permute.xlu0 %768
        %v771 = vsel %vm636, %v699, %v769
        %v772 = vld [vmem:[%s5] sm:$0xff]
        %v773 = vld [vmem:[%s5 + $0x8] sm:$0xff]
        %v774 = vld [vmem:[%s5 + $0x10] sm:$0xff]
        %v775 = vld [vmem:[%s5 + $0x18] sm:$0xff]
        %v776 = vld [vmem:[%s6] sm:$0x1]
        %v778 = vperm.slane %v776, 0
        %v781 = vsel %vm563, %v771, 0
        %783 = vmatpush.msra.mxu0 0.0
        %784 = vmatpush.msra.mxu0 0.0
        %785 = vmatpush.msra.mxu0 0.0
        %786 = vmatpush.msra.mxu0 0.0
        %787 = vmatpush.msra.mxu0 0.0
        %788 = vmatpush.msra.mxu0 0.0
        %789 = vmatpush.msra.mxu0 0.0
        %790 = vmatpush.msra.mxu0 0.0
        %791 = vmatpush.msra.mxu0 0.0
        %792 = vmatpush.msra.mxu0 0.0
        %793 = vmatpush.msra.mxu0 0.0
        %794 = vmatpush.msra.mxu0 0.0
        %795 = vmatpush.msra.mxu0 %v775
        %796 = vmatpush.msra.mxu0 %v774
        %797 = vmatpush.msra.mxu0 %v773
        %798 = vmatpush.msra.mxu0 %v772
        %799 = vmatmul.f32.gmra.mxu0 %v781
        %v800 = vpop.f32.mrf.mxu0
        %v801 = vadd.f32 %v778, %v800
        %802 = vdwg.mxu0
        %v803 = vadd.f32 %v555, %v801
        %v804 = vld [vmem:[%s7] sm:$0x1]
        %v805 = vld [vmem:[%s8] sm:$0x1]
        %v806 = vsel %vm563, %v803, 0.0
        %807 = vadd.xlane.f32.xlu0 %v806
        %v808 = vpop.xlane.xlu0 %807
        %v809 = vmul.f32 %v808, %v573
        %v810 = vsub.f32 %v803, %v809
        %v811 = vmul.f32 %v810, %v810
        %v812 = vsel %vm563, %v811, 0.0
        %813 = vadd.xlane.f32.xlu0 %v812
        %v814 = vpop.xlane.xlu0 %813
        %v815 = vmul.f32 %v814, %v573
        %v816 = vadd.f32 %v815, 1e-05
        %v817 = vrsqrt.pop %v816
        %v818 = vmul.f32 %v817, %v816
        %v819 = vmul.f32 %v818, %v817
        %v820 = vmul.f32 0.5, %v819
        %v821 = vsub.f32 1.5, %v820
        %v822 = vmul.f32 %v817, %v821
        %vm823 = vweird.f32 %v816
        %vm824 = vweird.f32 %v817
        %vm825 = vmor %vm823, %vm824
        %v826 = vsel %vm825, %v817, %v822
        %v827 = vmul.f32 %v810, %v826
        %v829 = vperm.slane %v804, 0
        %v831 = vmul.f32 %v827, %v829
        %v833 = vperm.slane %v805, 0
        %v835 = vadd.f32 %v831, %v833
        %v836 = vld [vmem:[%s9] sm:$0xff]
        %v837 = vld [vmem:[%s9 + $0x8] sm:$0xff]
        %v838 = vld [vmem:[%s9 + $0x10] sm:$0xff]
        %v839 = vld [vmem:[%s9 + $0x18] sm:$0xff]
        %v840 = vld [vmem:[%s10] sm:$0x1]
        %v842 = vperm.slane %v840, 0
        %v845 = vsel %vm563, %v835, 0
        %847 = vmatpush.msra.mxu0 0.0
        %848 = vmatpush.msra.mxu0 0.0
        %849 = vmatpush.msra.mxu0 0.0
        %850 = vmatpush.msra.mxu0 0.0
        %851 = vmatpush.msra.mxu0 0.0
        %852 = vmatpush.msra.mxu0 0.0
        %853 = vmatpush.msra.mxu0 0.0
        %854 = vmatpush.msra.mxu0 0.0
        %855 = vmatpush.msra.mxu0 0.0
        %856 = vmatpush.msra.mxu0 0.0
        %857 = vmatpush.msra.mxu0 0.0
        %858 = vmatpush.msra.mxu0 0.0
        %859 = vmatpush.msra.mxu0 %v839
        %860 = vmatpush.msra.mxu0 %v838
        %861 = vmatpush.msra.mxu0 %v837
        %862 = vmatpush.msra.mxu0 %v836
        %863 = vmatmul.f32.gmra.mxu0 %v845
        %v864 = vpop.f32.mrf.mxu0
        %v865 = vadd.f32 %v842, %v864
        %866 = vdwg.mxu0
        %v867 = vmax.f32 %v865, 0.0
        %v868 = vld [vmem:[%s11] sm:$0xff]
        %v869 = vld [vmem:[%s11 + $0x8] sm:$0xff]
        %v870 = vld [vmem:[%s11 + $0x10] sm:$0xff]
        %v871 = vld [vmem:[%s11 + $0x18] sm:$0xff]
        %v872 = vld [vmem:[%s11 + $0x20] sm:$0xff]
        %v873 = vld [vmem:[%s11 + $0x28] sm:$0xff]
        %v874 = vld [vmem:[%s11 + $0x30] sm:$0xff]
        %v875 = vld [vmem:[%s11 + $0x38] sm:$0xff]
        %v876 = vld [vmem:[%s12] sm:$0x1]
        %v878 = vperm.slane %v876, 0
        %vm880 = vcmask 523264
        %v882 = vsel %vm880, %v867, 0
        %884 = vmatpush.msra.mxu0 0.0
        %885 = vmatpush.msra.mxu0 0.0
        %886 = vmatpush.msra.mxu0 0.0
        %887 = vmatpush.msra.mxu0 0.0
        %888 = vmatpush.msra.mxu0 0.0
        %889 = vmatpush.msra.mxu0 0.0
        %890 = vmatpush.msra.mxu0 0.0
        %891 = vmatpush.msra.mxu0 0.0
        %892 = vmatpush.msra.mxu0 %v875
        %893 = vmatpush.msra.mxu0 %v874
        %894 = vmatpush.msra.mxu0 %v873
        %895 = vmatpush.msra.mxu0 %v872
        %896 = vmatpush.msra.mxu0 %v871
        %897 = vmatpush.msra.mxu0 %v870
        %898 = vmatpush.msra.mxu0 %v869
        %899 = vmatpush.msra.mxu0 %v868
        %900 = vmatmul.f32.gmra.mxu0 %v882
        %v901 = vpop.f32.mrf.mxu0
        %v902 = vadd.f32 %v878, %v901
        %903 = vdwg.mxu0
        %v904 = vadd.f32 %v803, %v902
        %s905 = scalar_lea.vmem %s1, 1
        %v906 = vld [vmem:[%s905] sm:$0x1]
        %s907 = scalar_lea.vmem %s2, 1
        %v908 = vld [vmem:[%s907] sm:$0x1]
        %v909 = vsel %vm563, %v904, 0.0
        %910 = vadd.xlane.f32.xlu0 %v909
        %v911 = vpop.xlane.xlu0 %910
        %v912 = vmul.f32 %v911, %v573
        %v913 = vsub.f32 %v904, %v912
        %v914 = vmul.f32 %v913, %v913
        %v915 = vsel %vm563, %v914, 0.0
        %916 = vadd.xlane.f32.xlu0 %v915
        %v917 = vpop.xlane.xlu0 %916
        %v918 = vmul.f32 %v917, %v573
        %v919 = vadd.f32 %v918, 1e-05
        %v920 = vrsqrt.pop %v919
        %v921 = vmul.f32 %v920, %v919
        %v922 = vmul.f32 %v921, %v920
        %v923 = vmul.f32 0.5, %v922
        %v924 = vsub.f32 1.5, %v923
        %v925 = vmul.f32 %v920, %v924
        %vm926 = vweird.f32 %v919
        %vm927 = vweird.f32 %v920
        %vm928 = vmor %vm926, %vm927
        %v929 = vsel %vm928, %v920, %v925
        %v930 = vmul.f32 %v913, %v929
        %v932 = vperm.slane %v906, 0
        %v934 = vmul.f32 %v930, %v932
        %v936 = vperm.slane %v908, 0
        %v938 = vadd.f32 %v934, %v936
        %s939 = scalar_lea.vmem %s3, 32
        %v940 = vld [vmem:[%s939] sm:$0xff]
        %v941 = vld [vmem:[%s939 + $0x8] sm:$0xff]
        %v942 = vld [vmem:[%s939 + $0x10] sm:$0xff]
        %v943 = vld [vmem:[%s939 + $0x18] sm:$0xff]
        %s944 = scalar_lea.vmem %s4, 1
        %v945 = vld [vmem:[%s944] sm:$0x1]
        %v947 = vperm.slane %v945, 0
        %v950 = vsel %vm563, %v938, 0
        %952 = vmatpush.msra.mxu0 0.0
        %953 = vmatpush.msra.mxu0 0.0
        %954 = vmatpush.msra.mxu0 0.0
        %955 = vmatpush.msra.mxu0 0.0
        %956 = vmatpush.msra.mxu0 0.0
        %957 = vmatpush.msra.mxu0 0.0
        %958 = vmatpush.msra.mxu0 0.0
        %959 = vmatpush.msra.mxu0 0.0
        %960 = vmatpush.msra.mxu0 0.0
        %961 = vmatpush.msra.mxu0 0.0
        %962 = vmatpush.msra.mxu0 0.0
        %963 = vmatpush.msra.mxu0 0.0
        %964 = vmatpush.msra.mxu0 %v943
        %965 = vmatpush.msra.mxu0 %v942
        %966 = vmatpush.msra.mxu0 %v941
        %967 = vmatpush.msra.mxu0 %v940
        %968 = vmatmul.f32.gmra.mxu0 %v950
        %v969 = vpop.f32.mrf.mxu0
        %v970 = vadd.f32 %v947, %v969
        %971 = vdwg.mxu0
        %v972 = vmul.f32 %v970, 0.25
        %974 = vrot.lane.b32.xlu0 %v970, 96
        %v975 = vpop.permute.xlu0 %974
        %v977 = vsel %vm636, %v972, 0
        %v979 = vsel %vm636, %v975, 0
        %981 = vmatpush.xpose.msra.mxu0 0.0
        %982 = vmatpush.xpose.msra.mxu0 0.0
        %983 = vmatpush.xpose.msra.mxu0 0.0
        %984 = vmatpush.xpose.msra.mxu0 0.0
        %985 = vmatpush.xpose.msra.mxu0 0.0
        %986 = vmatpush.xpose.msra.mxu0 0.0
        %987 = vmatpush.xpose.msra.mxu0 0.0
        %988 = vmatpush.xpose.msra.mxu0 0.0
        %989 = vmatpush.xpose.msra.mxu0 0.0
        %990 = vmatpush.xpose.msra.mxu0 0.0
        %991 = vmatpush.xpose.msra.mxu0 0.0
        %992 = vmatpush.xpose.msra.mxu0 0.0
        %993 = vmatpush.xpose.msra.mxu0 0.0
        %994 = vmatpush.xpose.msra.mxu0 0.0
        %995 = vmatpush.xpose.msra.mxu0 0.0
        %996 = vmatpush.xpose.msra.mxu0 %v979
        %997 = vmatmul.f32.gmra.mxu0 %v977
        %v998 = vpop.f32.mrf.mxu0
        %v999 = vadd.f32 0.0, %v998
        %1000 = vdwg.mxu0
        %v1001 = vsel %vm560, %v999, -1e+30
        %v1002 = vsel %vm663, %v1001, -inf
        %1003 = vmax.xlane.f32.xlu0 %v1002
        %v1004 = vpop.xlane.xlu0 %1003
        %v1005 = vsub.f32 %v1001, %v1004
        %v1006 = vmul.f32 %v1005, 1.442695
        %v1007 = vpow.pop %v1006
        %v1008 = vsel %vm663, %v1007, 0.0
        %1009 = vadd.xlane.f32.xlu0 %v1008
        %v1010 = vpop.xlane.xlu0 %1009
        %v1011 = vrcp.pop %v1010
        %v1012 = vmul.f32 %v1007, %v1011
        %1013 = vrot.lane.b32.xlu0 %v970, 64
        %v1014 = vpop.permute.xlu0 %1013
        %v1017 = vsel %vm663, %v1012, 0
        %1019 = vmatpush.msra.mxu0 0.0
        %1020 = vmatpush.msra.mxu0 0.0
        %1021 = vmatpush.msra.mxu0 0.0
        %1022 = vmatpush.msra.mxu0 0.0
        %1023 = vmatpush.msra.mxu0 0.0
        %1024 = vmatpush.msra.mxu0 0.0
        %1025 = vmatpush.msra.mxu0 0.0
        %1026 = vmatpush.msra.mxu0 0.0
        %1027 = vmatpush.msra.mxu0 0.0
        %1028 = vmatpush.msra.mxu0 0.0
        %1029 = vmatpush.msra.mxu0 0.0
        %1030 = vmatpush.msra.mxu0 0.0
        %1031 = vmatpush.msra.mxu0 0.0
        %1032 = vmatpush.msra.mxu0 0.0
        %1033 = vmatpush.msra.mxu0 0.0
        %1034 = vmatpush.msra.mxu0 %v1014
        %1035 = vmatmul.f32.gmra.mxu0 %v1017
        %v1036 = vpop.f32.mrf.mxu0
        %v1037 = vadd.f32 0.0, %v1036
        %1038 = vdwg.mxu0
        %1039 = vrot.lane.b32.xlu0 %v972, 112
        %v1040 = vpop.permute.xlu0 %1039
        %1041 = vrot.lane.b32.xlu0 %v970, 80
        %v1042 = vpop.permute.xlu0 %1041
        %v1043 = vsel %vm636, %v1040, 0
        %v1045 = vsel %vm636, %v1042, 0
        %1047 = vmatpush.xpose.msra.mxu0 0.0
        %1048 = vmatpush.xpose.msra.mxu0 0.0
        %1049 = vmatpush.xpose.msra.mxu0 0.0
        %1050 = vmatpush.xpose.msra.mxu0 0.0
        %1051 = vmatpush.xpose.msra.mxu0 0.0
        %1052 = vmatpush.xpose.msra.mxu0 0.0
        %1053 = vmatpush.xpose.msra.mxu0 0.0
        %1054 = vmatpush.xpose.msra.mxu0 0.0
        %1055 = vmatpush.xpose.msra.mxu0 0.0
        %1056 = vmatpush.xpose.msra.mxu0 0.0
        %1057 = vmatpush.xpose.msra.mxu0 0.0
        %1058 = vmatpush.xpose.msra.mxu0 0.0
        %1059 = vmatpush.xpose.msra.mxu0 0.0
        %1060 = vmatpush.xpose.msra.mxu0 0.0
        %1061 = vmatpush.xpose.msra.mxu0 0.0
        %1062 = vmatpush.xpose.msra.mxu0 %v1045
        %1063 = vmatmul.f32.gmra.mxu0 %v1043
        %v1064 = vpop.f32.mrf.mxu0
        %v1065 = vadd.f32 0.0, %v1064
        %1066 = vdwg.mxu0
        %v1067 = vsel %vm560, %v1065, -1e+30
        %v1068 = vsel %vm663, %v1067, -inf
        %1069 = vmax.xlane.f32.xlu0 %v1068
        %v1070 = vpop.xlane.xlu0 %1069
        %v1071 = vsub.f32 %v1067, %v1070
        %v1072 = vmul.f32 %v1071, 1.442695
        %v1073 = vpow.pop %v1072
        %v1074 = vsel %vm663, %v1073, 0.0
        %1075 = vadd.xlane.f32.xlu0 %v1074
        %v1076 = vpop.xlane.xlu0 %1075
        %v1077 = vrcp.pop %v1076
        %v1078 = vmul.f32 %v1073, %v1077
        %1079 = vrot.lane.b32.xlu0 %v970, 48
        %v1080 = vpop.permute.xlu0 %1079
        %v1083 = vsel %vm663, %v1078, 0
        %1085 = vmatpush.msra.mxu0 0.0
        %1086 = vmatpush.msra.mxu0 0.0
        %1087 = vmatpush.msra.mxu0 0.0
        %1088 = vmatpush.msra.mxu0 0.0
        %1089 = vmatpush.msra.mxu0 0.0
        %1090 = vmatpush.msra.mxu0 0.0
        %1091 = vmatpush.msra.mxu0 0.0
        %1092 = vmatpush.msra.mxu0 0.0
        %1093 = vmatpush.msra.mxu0 0.0
        %1094 = vmatpush.msra.mxu0 0.0
        %1095 = vmatpush.msra.mxu0 0.0
        %1096 = vmatpush.msra.mxu0 0.0
        %1097 = vmatpush.msra.mxu0 0.0
        %1098 = vmatpush.msra.mxu0 0.0
        %1099 = vmatpush.msra.mxu0 0.0
        %1100 = vmatpush.msra.mxu0 %v1080
        %1101 = vmatmul.f32.gmra.mxu0 %v1083
        %v1102 = vpop.f32.mrf.mxu0
        %v1103 = vadd.f32 0.0, %v1102
        %1104 = vdwg.mxu0
        %1106 = vrot.lane.b32.xlu0 %v1103, 16
        %v1107 = vpop.permute.xlu0 %1106
        %v1109 = vsel %vm636, %v1037, %v1107
        %s1110 = scalar_lea.vmem %s5, 32
        %v1111 = vld [vmem:[%s1110] sm:$0xff]
        %v1112 = vld [vmem:[%s1110 + $0x8] sm:$0xff]
        %v1113 = vld [vmem:[%s1110 + $0x10] sm:$0xff]
        %v1114 = vld [vmem:[%s1110 + $0x18] sm:$0xff]
        %s1115 = scalar_lea.vmem %s6, 1
        %v1116 = vld [vmem:[%s1115] sm:$0x1]
        %v1118 = vperm.slane %v1116, 0
        %v1121 = vsel %vm563, %v1109, 0
        %1123 = vmatpush.msra.mxu0 0.0
        %1124 = vmatpush.msra.mxu0 0.0
        %1125 = vmatpush.msra.mxu0 0.0
        %1126 = vmatpush.msra.mxu0 0.0
        %1127 = vmatpush.msra.mxu0 0.0
        %1128 = vmatpush.msra.mxu0 0.0
        %1129 = vmatpush.msra.mxu0 0.0
        %1130 = vmatpush.msra.mxu0 0.0
        %1131 = vmatpush.msra.mxu0 0.0
        %1132 = vmatpush.msra.mxu0 0.0
        %1133 = vmatpush.msra.mxu0 0.0
        %1134 = vmatpush.msra.mxu0 0.0
        %1135 = vmatpush.msra.mxu0 %v1114
        %1136 = vmatpush.msra.mxu0 %v1113
        %1137 = vmatpush.msra.mxu0 %v1112
        %1138 = vmatpush.msra.mxu0 %v1111
        %1139 = vmatmul.f32.gmra.mxu0 %v1121
        %v1140 = vpop.f32.mrf.mxu0
        %v1141 = vadd.f32 %v1118, %v1140
        %1142 = vdwg.mxu0
        %v1143 = vadd.f32 %v904, %v1141
        %s1144 = scalar_lea.vmem %s7, 1
        %v1145 = vld [vmem:[%s1144] sm:$0x1]
        %s1146 = scalar_lea.vmem %s8, 1
        %v1147 = vld [vmem:[%s1146] sm:$0x1]
        %v1148 = vsel %vm563, %v1143, 0.0
        %1149 = vadd.xlane.f32.xlu0 %v1148
        %v1150 = vpop.xlane.xlu0 %1149
        %v1151 = vmul.f32 %v1150, %v573
        %v1152 = vsub.f32 %v1143, %v1151
        %v1153 = vmul.f32 %v1152, %v1152
        %v1154 = vsel %vm563, %v1153, 0.0
        %1155 = vadd.xlane.f32.xlu0 %v1154
        %v1156 = vpop.xlane.xlu0 %1155
        %v1157 = vmul.f32 %v1156, %v573
        %v1158 = vadd.f32 %v1157, 1e-05
        %v1159 = vrsqrt.pop %v1158
        %v1160 = vmul.f32 %v1159, %v1158
        %v1161 = vmul.f32 %v1160, %v1159
        %v1162 = vmul.f32 0.5, %v1161
        %v1163 = vsub.f32 1.5, %v1162
        %v1164 = vmul.f32 %v1159, %v1163
        %vm1165 = vweird.f32 %v1158
        %vm1166 = vweird.f32 %v1159
        %vm1167 = vmor %vm1165, %vm1166
        %v1168 = vsel %vm1167, %v1159, %v1164
        %v1169 = vmul.f32 %v1152, %v1168
        %v1171 = vperm.slane %v1145, 0
        %v1173 = vmul.f32 %v1169, %v1171
        %v1175 = vperm.slane %v1147, 0
        %v1177 = vadd.f32 %v1173, %v1175
        %s1178 = scalar_lea.vmem %s9, 32
        %v1179 = vld [vmem:[%s1178] sm:$0xff]
        %v1180 = vld [vmem:[%s1178 + $0x8] sm:$0xff]
        %v1181 = vld [vmem:[%s1178 + $0x10] sm:$0xff]
        %v1182 = vld [vmem:[%s1178 + $0x18] sm:$0xff]
        %s1183 = scalar_lea.vmem %s10, 1
        %v1184 = vld [vmem:[%s1183] sm:$0x1]
        %v1186 = vperm.slane %v1184, 0
        %v1189 = vsel %vm563, %v1177, 0
        %1191 = vmatpush.msra.mxu0 0.0
        %1192 = vmatpush.msra.mxu0 0.0
        %1193 = vmatpush.msra.mxu0 0.0
        %1194 = vmatpush.msra.mxu0 0.0
        %1195 = vmatpush.msra.mxu0 0.0
        %1196 = vmatpush.msra.mxu0 0.0
        %1197 = vmatpush.msra.mxu0 0.0
        %1198 = vmatpush.msra.mxu0 0.0
        %1199 = vmatpush.msra.mxu0 0.0
        %1200 = vmatpush.msra.mxu0 0.0
        %1201 = vmatpush.msra.mxu0 0.0
        %1202 = vmatpush.msra.mxu0 0.0
        %1203 = vmatpush.msra.mxu0 %v1182
        %1204 = vmatpush.msra.mxu0 %v1181
        %1205 = vmatpush.msra.mxu0 %v1180
        %1206 = vmatpush.msra.mxu0 %v1179
        %1207 = vmatmul.f32.gmra.mxu0 %v1189
        %v1208 = vpop.f32.mrf.mxu0
        %v1209 = vadd.f32 %v1186, %v1208
        %1210 = vdwg.mxu0
        %v1211 = vmax.f32 %v1209, 0.0
        %s1212 = scalar_lea.vmem %s11, 64
        %v1213 = vld [vmem:[%s1212] sm:$0xff]
        %v1214 = vld [vmem:[%s1212 + $0x8] sm:$0xff]
        %v1215 = vld [vmem:[%s1212 + $0x10] sm:$0xff]
        %v1216 = vld [vmem:[%s1212 + $0x18] sm:$0xff]
        %v1217 = vld [vmem:[%s1212 + $0x20] sm:$0xff]
        %v1218 = vld [vmem:[%s1212 + $0x28] sm:$0xff]
        %v1219 = vld [vmem:[%s1212 + $0x30] sm:$0xff]
        %v1220 = vld [vmem:[%s1212 + $0x38] sm:$0xff]
        %s1221 = scalar_lea.vmem %s12, 1
        %v1222 = vld [vmem:[%s1221] sm:$0x1]
        %v1224 = vperm.slane %v1222, 0
        %v1227 = vsel %vm880, %v1211, 0
        %1229 = vmatpush.msra.mxu0 0.0
        %1230 = vmatpush.msra.mxu0 0.0
        %1231 = vmatpush.msra.mxu0 0.0
        %1232 = vmatpush.msra.mxu0 0.0
        %1233 = vmatpush.msra.mxu0 0.0
        %1234 = vmatpush.msra.mxu0 0.0
        %1235 = vmatpush.msra.mxu0 0.0
        %1236 = vmatpush.msra.mxu0 0.0
        %1237 = vmatpush.msra.mxu0 %v1220
        %1238 = vmatpush.msra.mxu0 %v1219
        %1239 = vmatpush.msra.mxu0 %v1218
        %1240 = vmatpush.msra.mxu0 %v1217
        %1241 = vmatpush.msra.mxu0 %v1216
        %1242 = vmatpush.msra.mxu0 %v1215
        %1243 = vmatpush.msra.mxu0 %v1214
        %1244 = vmatpush.msra.mxu0 %v1213
        %1245 = vmatmul.f32.gmra.mxu0 %v1227
        %v1246 = vpop.f32.mrf.mxu0
        %v1247 = vadd.f32 %v1224, %v1246
        %1248 = vdwg.mxu0
        %v1249 = vadd.f32 %v1143, %v1247
        %v1250 = vld [vmem:[%s13] sm:$0x1]
        %v1251 = vld [vmem:[%s14] sm:$0x1]
        %v1252 = vsel %vm563, %v1249, 0.0
        %1253 = vadd.xlane.f32.xlu0 %v1252
        %v1254 = vpop.xlane.xlu0 %1253
        %v1255 = vmul.f32 %v1254, %v573
        %v1256 = vsub.f32 %v1249, %v1255
        %v1257 = vmul.f32 %v1256, %v1256
        %v1258 = vsel %vm563, %v1257, 0.0
        %1259 = vadd.xlane.f32.xlu0 %v1258
        %v1260 = vpop.xlane.xlu0 %1259
        %v1261 = vmul.f32 %v1260, %v573
        %v1262 = vadd.f32 %v1261, 1e-05
        %v1263 = vrsqrt.pop %v1262
        %v1264 = vmul.f32 %v1263, %v1262
        %v1265 = vmul.f32 %v1264, %v1263
        %v1266 = vmul.f32 0.5, %v1265
        %v1267 = vsub.f32 1.5, %v1266
        %v1268 = vmul.f32 %v1263, %v1267
        %vm1269 = vweird.f32 %v1262
        %vm1270 = vweird.f32 %v1263
        %vm1271 = vmor %vm1269, %vm1270
        %v1272 = vsel %vm1271, %v1263, %v1268
        %v1273 = vmul.f32 %v1256, %v1272
        %v1275 = vperm.slane %v1250, 0
        %v1277 = vmul.f32 %v1273, %v1275
        %v1279 = vperm.slane %v1251, 0
        %v1281 = vadd.f32 %v1277, %v1279
        %1282 = vst.msk [vmem:[%s543] sm:$0xff] %vm563, %v1281
        %v1283 = vld [vmem:[%s15] sm:$0xff]
        %v1284 = vld [vmem:[%s15 + $0x8] sm:$0xff]
        %v1285 = vld [vmem:[%s15 + $0x10] sm:$0xff]
        %v1286 = vld [vmem:[%s15 + $0x18] sm:$0xff]
        %v1288 = vsel %vm563, %v1281, 0
        %1290 = vmatpush.msra.mxu0 0.0
        %1291 = vmatpush.msra.mxu0 0.0
        %1292 = vmatpush.msra.mxu0 0.0
        %1293 = vmatpush.msra.mxu0 0.0
        %1294 = vmatpush.msra.mxu0 0.0
        %1295 = vmatpush.msra.mxu0 0.0
        %1296 = vmatpush.msra.mxu0 0.0
        %1297 = vmatpush.msra.mxu0 0.0
        %1298 = vmatpush.msra.mxu0 0.0
        %1299 = vmatpush.msra.mxu0 0.0
        %1300 = vmatpush.msra.mxu0 0.0
        %1301 = vmatpush.msra.mxu0 0.0
        %1302 = vmatpush.msra.mxu0 %v1286
        %1303 = vmatpush.msra.mxu0 %v1285
        %1304 = vmatpush.msra.mxu0 %v1284
        %1305 = vmatpush.msra.mxu0 %v1283
        %1306 = vmatmul.f32.gmra.mxu0 %v1288
        %v1307 = vpop.f32.mrf.mxu0
        %v1308 = vadd.f32 0.0, %v1307
        %1309 = vdwg.mxu0
        %1310 = vmax.xlane.f32.xlu0 %v1308
        %v1311 = vpop.xlane.xlu0 %1310
        %v1312 = vsub.f32 %v1308, %v1311
        %v1313 = vmul.f32 %v1312, 1.442695
        %v1314 = vpow.pop %v1313
        %1315 = vadd.xlane.f32.xlu0 %v1314
        %v1316 = vpop.xlane.xlu0 %1315
        %v1317 = vrcp.pop %v1316
        %v1318 = vmul.f32 %v1314, %v1317
        %1319 = vst [vmem:[%s550] sm:$0xff] %v1318
        %s1320 = sand.u32 %s384, 1
        %s1321 = scalar_lea.sflag [#allocation3], %s1320
        %s1322 = sand.u32 %s384, 1
        %s1323 = smul.addr %s1322, 8
        %s1324 = scalar_lea.vmem [#allocation2], %s1323
        %s1325 = sand.u32 %s410, 1
        %s1326 = scalar_lea.sflag [#allocation5], %s1325
        %s1327 = sand.u32 %s410, 1
        %s1328 = smul.addr %s1327, 8
        %s1329 = scalar_lea.vmem [#allocation4], %s1328
        // Predicated region
        $region85: #{coherence_forward.1} parent=83 // pred_check
          %p1330 = pneg %p394
        $region86: #{coherence_forward.1} parent=83 // pred_check_branch
          %1332 = sbr.rel (%p1330) target = $region88
        $region87: #{coherence_forward.1} parent=83 // pred_region
          %1334 = vsyncadd %s1321, 0
          %s1335 = smul.addr %s35, 8
          %s1336 = scalar_lea.hbm %s16, %s1335
          %s1338 = sshll.u32 %s1324, 4
          %s1339 = int_to_ptr.vmem [resolvable:$true] %s1338
          %s1340 = sshll.u32 %s1336, 4
          %s1341 = int_to_ptr.hbm [resolvable:$true] %s1340
          %1343 = dma.vmem_to_hbm [thread:$0]  %s1339, 128, %s1341, %s1321
        $region88: #{coherence_forward.1} parent=83 // pred_fallthru
          _
        // Predicated region
        $region89: #{coherence_forward.1} parent=83 // pred_check
          %p1344 = pneg %p420
        $region90: #{coherence_forward.1} parent=83 // pred_check_branch
          %1346 = sbr.rel (%p1344) target = $region92
        $region91: #{coherence_forward.1} parent=83 // pred_region
          %1348 = vsyncadd %s1326, 0
          %s1349 = smul.addr %s35, 8
          %s1350 = scalar_lea.hbm %s17, %s1349
          %s1352 = sshll.u32 %s1329, 4
          %s1353 = int_to_ptr.vmem [resolvable:$true] %s1352
          %s1354 = sshll.u32 %s1350, 4
          %s1355 = int_to_ptr.hbm [resolvable:$true] %s1354
          %1357 = dma.vmem_to_hbm [thread:$0]  %s1353, 128, %s1355, %s1326
        $region92: #{coherence_forward.1} parent=83 // pred_fallthru
          _
      $region84: #{coherence_forward.1} parent=5 // pred_fallthru
        _
      %p1358 = scmp.le.s32.totalorder 2, %s30
      // Predicated region
      $region93: #{coherence_forward.1} parent=5 // pred_check
        %p1359 = pneg %p1358
      $region94: #{coherence_forward.1} parent=5 // pred_check_branch
        %1361 = sbr.rel (%p1359) target = $region96
      $region95: #{coherence_forward.1} parent=5 // pred_region
        %s1362 = ssub.s32 %s30, 2
        // Predicated region
        $region97: #{coherence_forward.1} parent=95 // pred_check
          %p1363 = pneg %p400
        $region98: #{coherence_forward.1} parent=95 // pred_check_branch
          %1365 = sbr.rel (%p1363) target = $region100
        $region99: #{coherence_forward.1} parent=95 // pred_region
          %s1366 = sand.u32 %s385, 1
          %s1367 = scalar_lea.sflag [#allocation3], %s1366
          %s1368 = sand.u32 %s385, 1
          %s1369 = smul.addr %s1368, 8
          %s1370 = scalar_lea.vmem [#allocation2], %s1369
          %1372 = dma.done %s1367, 128
        $region100: #{coherence_forward.1} parent=95 // pred_fallthru
          _
        // Predicated region
        $region101: #{coherence_forward.1} parent=95 // pred_check
          %p1373 = pneg %p426
        $region102: #{coherence_forward.1} parent=95 // pred_check_branch
          %1375 = sbr.rel (%p1373) target = $region104
        $region103: #{coherence_forward.1} parent=95 // pred_region
          %s1376 = sand.u32 %s411, 1
          %s1377 = scalar_lea.sflag [#allocation5], %s1376
          %s1378 = sand.u32 %s411, 1
          %s1379 = smul.addr %s1378, 8
          %s1380 = scalar_lea.vmem [#allocation4], %s1379
          %1382 = dma.done %s1377, 128
        $region104: #{coherence_forward.1} parent=95 // pred_fallthru
          _
      $region96: #{coherence_forward.1} parent=5 // pred_fallthru
        _
    $region6: #{coherence_forward.1} parent=1 // loop_footer
      %s34 = sadd.s32 1, %s30
    $region7: #{coherence_forward.1} parent=1 // loop_footer_branch
      %29 = sbr.rel target = $region3
    $region8: #{coherence_forward.1} parent=1 // loop_exit
      _
    %1383 = vsyncpa [#allocation3], 1
    %s1384 = scalar_lea.sflag [#allocation3], 1
    %1385 = vsyncpa %s1384, 1
    %1386 = vsyncpa [#allocation5], 1
    %s1387 = scalar_lea.sflag [#allocation5], 1
    %1388 = vsyncpa %s1387, 1

</llo_original>
